<compile_context>
chip_gen: v6e
topology: v6e:2x2x1
jax: 0.10.0
libtpu: 0.0.40
codegen_flags: <defaults>
</compile_context>

<pallas_src>
import functools

import jax
import jax.numpy as jnp
from jax.experimental import pallas as pl
from jax.experimental.pallas import tpu as pltpu

_NEG_SLOPE = 0.01                     # nn.LeakyReLU() default
_BN_EPS = 1e-5                        # nn.BatchNorm1d default
_VMEM_LIMIT = 48 * 1024 * 1024        # safe on v5e/v6e (128 MiB) and v7x (64 MiB)
_FUSED_VMEM_CAP = 40 * 1024 * 1024    # max estimated VMEM for the fused single-call path


def _round_up(v, m):
    return ((v + m - 1) // m) * m


def _mlp_tile(x_ref, w1_ref, b1_ref, w2_ref, b2_ref):
    """Linear -> LeakyReLU -> Linear on one row tile.

    Matmul operands may be bf16 (MXU-native); accumulation is f32 via
    preferred_element_type, and bias/activation math stays f32.
    """
    h = jnp.dot(x_ref[...], w1_ref[...],
                preferred_element_type=jnp.float32) + b1_ref[...]
    h = jnp.where(h > 0, h, _NEG_SLOPE * h)          # LeakyReLU(0.01)
    y = jnp.dot(h.astype(w2_ref.dtype), w2_ref[...],
                preferred_element_type=jnp.float32) + b2_ref[...]
    return y


def _emit_stats(y, i, emit, *, block_rows, n_valid, need_mask, num_tiles):
    """Call `emit(y_masked)`; the padded-row mask only runs on the last tile."""
    if not need_mask:
        emit(y)
        return

    @pl.when(i != num_tiles - 1)
    def _():
        emit(y)

    @pl.when(i == num_tiles - 1)
    def _():
        row = i * block_rows + jax.lax.broadcasted_iota(jnp.int32, y.shape, 0)
        emit(jnp.where(row < n_valid, y, 0.0))


def _bn_scale_shift(stats, gamma, beta, inv_n):
    """Fold training-mode BatchNorm1d into one multiply-add: y*scale + shift."""
    mean = stats[0:1, :] * inv_n
    var = stats[1:2, :] * inv_n - mean * mean         # biased batch variance
    scale = jax.lax.rsqrt(var + _BN_EPS) * gamma
    shift = beta - mean * scale
    return scale, shift


# ----------------------------------------------------------------------------
# Fused single-call kernel: grid = (phase, row_tile); y slab resident in VMEM.
# ----------------------------------------------------------------------------
def _fused_kernel(x_ref, w1_ref, b1_ref, w2_ref, b2_ref, gamma_ref, beta_ref,
                  o_ref, y_slab, stats_ref, *, block_rows, n_valid, num_tiles,
                  need_mask, inv_n):
    p = pl.program_id(0)   # 0: MLP + batch stats, 1: BatchNorm apply
    i = pl.program_id(1)   # row tile
    off = pl.multiple_of(i * block_rows, block_rows)

    @pl.when(jnp.logical_and(p == 0, i == 0))
    def _():
        stats_ref[...] = jnp.zeros_like(stats_ref)

    @pl.when(p == 0)
    def _():
        y = _mlp_tile(x_ref, w1_ref, b1_ref, w2_ref, b2_ref)
        y_slab[pl.ds(off, block_rows), :] = y

        def accum(yv):
            stats_ref[...] += jnp.concatenate(
                [jnp.sum(yv, axis=0, keepdims=True),
                 jnp.sum(yv * yv, axis=0, keepdims=True)], axis=0)

        _emit_stats(y, i, accum, block_rows=block_rows, n_valid=n_valid,
                    need_mask=need_mask, num_tiles=num_tiles)

    @pl.when(p == 1)
    def _():
        scale, shift = _bn_scale_shift(stats_ref[...], gamma_ref[...],
                                       beta_ref[...], inv_n)
        y = y_slab[pl.ds(off, block_rows), :]
        o_ref[...] = (y * scale + shift).astype(o_ref.dtype)


# ----------------------------------------------------------------------------
# Two-call fallback (large N): pass 1 MLP + per-tile partial stats (parallel),
# JAX reduces the tiny partials, pass 2 applies BN (parallel).
# ----------------------------------------------------------------------------
def _mlp_partial_stats_kernel(x_ref, w1_ref, b1_ref, w2_ref, b2_ref,
                              y_ref, stats_ref, *, block_rows, n_valid,
                              need_mask, num_tiles):
    i = pl.program_id(0)
    y = _mlp_tile(x_ref, w1_ref, b1_ref, w2_ref, b2_ref)
    y_ref[...] = y.astype(y_ref.dtype)

    def emit(yv):
        stats_ref[...] = jnp.concatenate(
            [jnp.sum(yv, axis=0, keepdims=True),
             jnp.sum(yv * yv, axis=0, keepdims=True)], axis=0)[None]

    _emit_stats(y, i, emit, block_rows=block_rows, n_valid=n_valid,
                need_mask=need_mask, num_tiles=num_tiles)


def _bn_apply_kernel(y_ref, stats_ref, gamma_ref, beta_ref, o_ref, *, inv_n):
    scale, shift = _bn_scale_shift(stats_ref[...], gamma_ref[...],
                                   beta_ref[...], inv_n)
    o_ref[...] = (y_ref[...].astype(jnp.float32) * scale + shift).astype(o_ref.dtype)


# ----------------------------------------------------------------------------
# Wrapper
# ----------------------------------------------------------------------------
def easy_mlp_forward(obj_embedding, w1, b1, w2, b2, gamma, beta, *,
                     block_rows=1024, use_bf16_matmul=True,
                     fused_vmem_budget_bytes=16 * 1024 * 1024):
    """Easy_MLP forward: (batch, neg_sample, input_dim) -> (batch, neg_sample, output_dim)."""
    batch, neg_sample, input_dim = obj_embedding.shape
    n = batch * neg_sample
    hidden_dim = w1.shape[1]
    output_dim = w2.shape[1]

    # Lane-dense padding of all feature dims (zero pad -> mathematically inert).
    in_pad = _round_up(input_dim, 128)
    hid_pad = _round_up(hidden_dim, 128)
    out_pad = _round_up(output_dim, 128)

    f32 = jnp.float32
    mm_dtype = jnp.bfloat16 if use_bf16_matmul else f32
    mm_bytes = jnp.dtype(mm_dtype).itemsize
    out_dtype = obj_embedding.dtype
    out_bytes = jnp.dtype(out_dtype).itemsize
    row_align = 16 if use_bf16_matmul else 8     # bf16 packs 2 rows per sublane

    tm = block_rows if n >= block_rows else n
    tm = _round_up(tm, row_align)
    n_pad = _round_up(n, tm)
    num_tiles = n_pad // tm
    need_mask = n_pad != n
    inv_n = 1.0 / float(n)

    # Pad + cast outside the kernel (bf16 operands also halve the HBM->VMEM bytes).
    x2d = obj_embedding.reshape(n, input_dim).astype(f32)
    x2d = jnp.pad(x2d, ((0, n_pad - n), (0, in_pad - input_dim))).astype(mm_dtype)
    w1p = jnp.pad(w1.astype(f32), ((0, in_pad - input_dim),
                                   (0, hid_pad - hidden_dim))).astype(mm_dtype)
    b1p = jnp.pad(b1.astype(f32), (0, hid_pad - hidden_dim)).reshape(1, hid_pad)
    w2p = jnp.pad(w2.astype(f32), ((0, hid_pad - hidden_dim),
                                   (0, out_pad - output_dim))).astype(mm_dtype)
    b2p = jnp.pad(b2.astype(f32), (0, out_pad - output_dim)).reshape(1, out_pad)
    gammap = jnp.pad(gamma.astype(f32), (0, out_pad - output_dim),
                     constant_values=1.0).reshape(1, out_pad)
    betap = jnp.pad(beta.astype(f32), (0, out_pad - output_dim)).reshape(1, out_pad)

    mlp_flops = 2 * n_pad * (in_pad * hid_pad + hid_pad * out_pad)
    x_bytes = n_pad * in_pad * mm_bytes
    weight_bytes = (in_pad * hid_pad + hid_pad * out_pad) * mm_bytes
    vec_bytes = (hid_pad + 3 * out_pad) * 4

    # Fused path eligibility: whole y slab + resident (double-buffered) weights +
    # per-tile buffers must fit the VMEM budget. For much larger feature dims a
    # hidden-dim (K) grid axis would be needed instead of full-weight residency.
    slab_bytes = n_pad * out_pad * 4
    per_tile_bytes = tm * (2 * in_pad * mm_bytes + 2 * out_pad * out_bytes
                           + 4 * (hid_pad + out_pad))
    fused_est = slab_bytes + 2 * weight_bytes + per_tile_bytes + (64 << 10)
    use_fused = (slab_bytes <= fused_vmem_budget_bytes
                 and fused_est <= _FUSED_VMEM_CAP)

    common = dict(block_rows=tm, n_valid=n, need_mask=need_mask, num_tiles=num_tiles)

    if use_fused:
        cost = pl.CostEstimate(
            flops=mlp_flops + 2 * n_pad * out_pad,
            transcendentals=0,
            bytes_accessed=x_bytes + weight_bytes + vec_bytes
                           + n_pad * out_pad * out_bytes)
        out2d = pl.pallas_call(
            functools.partial(_fused_kernel, inv_n=inv_n, **common),
            out_shape=jax.ShapeDtypeStruct((n_pad, out_pad), out_dtype),
            grid=(2, num_tiles),   # phase axis outermost: all stats before BN apply
            in_specs=[
                # x: walk tiles in phase 0; park on tile 0 in phase 1 (DMA elided).
                pl.BlockSpec((tm, in_pad), lambda p, i: (i * (1 - p), 0)),
                pl.BlockSpec((in_pad, hid_pad), lambda p, i: (0, 0)),
                pl.BlockSpec((1, hid_pad), lambda p, i: (0, 0)),
                pl.BlockSpec((hid_pad, out_pad), lambda p, i: (0, 0)),
                pl.BlockSpec((1, out_pad), lambda p, i: (0, 0)),
                pl.BlockSpec((1, out_pad), lambda p, i: (0, 0)),
                pl.BlockSpec((1, out_pad), lambda p, i: (0, 0)),
            ],
            # Output parks on block 0 in phase 0 (nothing written), walks tiles in phase 1.
            out_specs=pl.BlockSpec((tm, out_pad), lambda p, i: (i * p, 0)),
            scratch_shapes=[
                pltpu.VMEM((n_pad, out_pad), f32),   # resident y slab (no HBM round trip)
                pltpu.VMEM((2, out_pad), f32),       # [column sum; column sum of squares]
            ],
            compiler_params=pltpu.CompilerParams(
                dimension_semantics=("arbitrary", "arbitrary"),
                vmem_limit_bytes=_VMEM_LIMIT),
            cost_estimate=cost,
        )(x2d, w1p, b1p, w2p, b2p, gammap, betap)
    else:
        # ---- Pass 1: MLP + per-tile partial stats (row axis fully parallel) ----
        y_dtype = mm_dtype   # bf16 intermediate halves the HBM round trip
        cost1 = pl.CostEstimate(
            flops=mlp_flops, transcendentals=0,
            bytes_accessed=x_bytes + weight_bytes + vec_bytes
                           + n_pad * out_pad * jnp.dtype(y_dtype).itemsize
                           + num_tiles * 2 * out_pad * 4)
        y_pad, partials = pl.pallas_call(
            functools.partial(_mlp_partial_stats_kernel, **common),
            out_shape=(
                jax.ShapeDtypeStruct((n_pad, out_pad), y_dtype),
                jax.ShapeDtypeStruct((num_tiles, 2, out_pad), f32),
            ),
            grid=(num_tiles,),
            in_specs=[
                pl.BlockSpec((tm, in_pad), lambda i: (i, 0)),
                pl.BlockSpec((in_pad, hid_pad), lambda i: (0, 0)),
                pl.BlockSpec((1, hid_pad), lambda i: (0, 0)),
                pl.BlockSpec((hid_pad, out_pad), lambda i: (0, 0)),
                pl.BlockSpec((1, out_pad), lambda i: (0, 0)),
            ],
            out_specs=(
                pl.BlockSpec((tm, out_pad), lambda i: (i, 0)),
                pl.BlockSpec((1, 2, out_pad), lambda i: (i, 0, 0)),
            ),
            compiler_params=pltpu.CompilerParams(
                dimension_semantics=("parallel",),
                vmem_limit_bytes=_VMEM_LIMIT),
            cost_estimate=cost1,
        )(x2d, w1p, b1p, w2p, b2p)

        stats = jnp.sum(partials, axis=0)   # (2, out_pad) tiny reduction in plain JAX

        # ---- Pass 2: normalize each tile with full-batch statistics -----------
        cost2 = pl.CostEstimate(
            flops=2 * n_pad * out_pad, transcendentals=0,
            bytes_accessed=n_pad * out_pad * (jnp.dtype(y_dtype).itemsize + out_bytes)
                           + 4 * out_pad * 4)
        out2d = pl.pallas_call(
            functools.partial(_bn_apply_kernel, inv_n=inv_n),
            out_shape=jax.ShapeDtypeStruct((n_pad, out_pad), out_dtype),
            grid=(num_tiles,),
            in_specs=[
                pl.BlockSpec((tm, out_pad), lambda i: (i, 0)),
                pl.BlockSpec((2, out_pad), lambda i: (0, 0)),
                pl.BlockSpec((1, out_pad), lambda i: (0, 0)),
                pl.BlockSpec((1, out_pad), lambda i: (0, 0)),
            ],
            out_specs=pl.BlockSpec((tm, out_pad), lambda i: (i, 0)),
            compiler_params=pltpu.CompilerParams(
                dimension_semantics=("parallel",),
                vmem_limit_bytes=_VMEM_LIMIT),
            cost_estimate=cost2,
        )(y_pad, stats, gammap, betap)

    # TODO(synk): BatchNorm1d running_mean / running_var buffer updates are not emitted
    # (pure forward output only).
    return out2d[:n, :output_dim].reshape(batch, neg_sample, output_dim)


# ----------------------------------------------------------------------------
# Self-test
# ----------------------------------------------------------------------------
def _reference(x3d, w1, b1, w2, b2, gamma, beta):
    b, s, _ = x3d.shape
    x2d = x3d.reshape(b * s, -1)
    hp = jax.lax.Precision.HIGHEST
    h = jnp.dot(x2d, w1, precision=hp) + b1
    h = jnp.where(h > 0, h, _NEG_SLOPE * h)
    y = jnp.dot(h, w2, precision=hp) + b2
    mean = jnp.mean(y, axis=0, keepdims=True)
    var = jnp.mean((y - mean) ** 2, axis=0, keepdims=True)
    out = (y - mean) * jax.lax.rsqrt(var + _BN_EPS) * gamma + beta
    return out.reshape(b, s, -1)


def _check(name, out, ref, atol, rtol):
    assert out.shape == ref.shape, (name, out.shape, ref.shape)
    err = float(jnp.max(jnp.abs(out.astype(jnp.float32) - ref)))
    assert bool(jnp.allclose(out, ref, atol=atol, rtol=rtol)), (
        f"{name}: max abs err = {err} (atol={atol}, rtol={rtol})")


if __name__ == "__main__":
    # Module-default feature dims: input_dim=256, output_dim=64, layer_mul=2.
    batch, neg_sample = 2, 8
    input_dim, output_dim, layer_mul = 256, 64, 2
    hidden_dim = int(input_dim * layer_mul)

    key = jax.random.PRNGKey(0)
    kx, kx2, kw1, kb1, kw2, kb2, kg, kbt = jax.random.split(key, 8)

    x = jax.random.normal(kx, (batch, neg_sample, input_dim), dtype=jnp.float32)

    # Deterministic synthetic params (mimics PyTorch Linear uniform init scale).
    lim1 = 1.0 / (input_dim ** 0.5)
    w1 = jax.random.uniform(kw1, (input_dim, hidden_dim), minval=-lim1, maxval=lim1, dtype=jnp.float32)
    b1 = jax.random.uniform(kb1, (hidden_dim,), minval=-lim1, maxval=lim1, dtype=jnp.float32)
    lim2 = 1.0 / (hidden_dim ** 0.5)
    w2 = jax.random.uniform(kw2, (hidden_dim, output_dim), minval=-lim2, maxval=lim2, dtype=jnp.float32)
    b2 = jax.random.uniform(kb2, (output_dim,), minval=-lim2, maxval=lim2, dtype=jnp.float32)
    gamma = jax.random.uniform(kg, (output_dim,), minval=0.5, maxval=1.5, dtype=jnp.float32)
    beta = 0.1 * jax.random.normal(kbt, (output_dim,), dtype=jnp.float32)

    ref = _reference(x, w1, b1, w2, b2, gamma, beta)

    # 1) Default path: bf16 MXU operands, fused single pallas_call (y stays in VMEM).
    out = easy_mlp_forward(x, w1, b1, w2, b2, gamma, beta)
    jax.block_until_ready(out)
    _check("fused_bf16", out, ref, atol=1e-1, rtol=5e-2)

    # 2) Strict f32 path (fused).
    out_f32 = easy_mlp_forward(x, w1, b1, w2, b2, gamma, beta, use_bf16_matmul=False)
    _check("fused_f32", jax.block_until_ready(out_f32), ref, atol=5e-4, rtol=5e-4)

    # 3) Forced two-call tiled path (multiple row tiles, f32, parallel partial stats).
    out_2p = easy_mlp_forward(x, w1, b1, w2, b2, gamma, beta,
                              use_bf16_matmul=False, block_rows=8,
                              fused_vmem_budget_bytes=0)
    _check("two_pass_f32", jax.block_until_ready(out_2p), ref, atol=5e-4, rtol=5e-4)

    # 4) Ragged N (not a multiple of the row tile) on both paths (exercises masking).
    xr = jax.random.normal(kx2, (3, 9, input_dim), dtype=jnp.float32)
    ref_r = _reference(xr, w1, b1, w2, b2, gamma, beta)
    out_r = easy_mlp_forward(xr, w1, b1, w2, b2, gamma, beta)
    _check("fused_bf16_masked", jax.block_until_ready(out_r), ref_r, atol=1e-1, rtol=5e-2)
    out_r2 = easy_mlp_forward(xr, w1, b1, w2, b2, gamma, beta,
                              block_rows=16, fused_vmem_budget_bytes=0)
    _check("two_pass_bf16_masked", jax.block_until_ready(out_r2), ref_r, atol=1e-1, rtol=5e-2)

    print("KERNEL_OK")
</pallas_src>

<mosaic_0001>
module attributes {stable_mosaic.version = 11 : i64} {
  func.func @_fused_kernel(%arg0: i32, %arg1: i32, %arg2: memref<16x256xbf16, #tpu.memory_space<vmem>>, %arg3: memref<256x512xbf16, #tpu.memory_space<vmem>>, %arg4: memref<1x512xf32, #tpu.memory_space<vmem>>, %arg5: memref<512x128xbf16, #tpu.memory_space<vmem>>, %arg6: memref<1x128xf32, #tpu.memory_space<vmem>>, %arg7: memref<1x128xf32, #tpu.memory_space<vmem>>, %arg8: memref<1x128xf32, #tpu.memory_space<vmem>>, %arg9: memref<16x128xf32, #tpu.memory_space<vmem>>, %arg10: memref<16x128xf32, #tpu.memory_space<vmem>>, %arg11: memref<2x128xf32, #tpu.memory_space<vmem>>) attributes {dimension_semantics = [#tpu.dimension_semantics<arbitrary>, #tpu.dimension_semantics<arbitrary>], iteration_bounds = array<i64: 2, 1>, scalar_prefetch = 0 : i64, scratch_operands = 2 : i64, tpu.core_type = #tpu.core_type<tc>, window_params = [{transform_indices = @transform_0, window_bounds = array<i64: 16, 256>}, {pipeline_mode = #tpu.pipeline_mode<synchronous>, transform_indices = @transform_1, window_bounds = array<i64: 256, 512>}, {pipeline_mode = #tpu.pipeline_mode<synchronous>, transform_indices = @transform_2, window_bounds = array<i64: 1, 512>}, {pipeline_mode = #tpu.pipeline_mode<synchronous>, transform_indices = @transform_3, window_bounds = array<i64: 512, 128>}, {pipeline_mode = #tpu.pipeline_mode<synchronous>, transform_indices = @transform_4, window_bounds = array<i64: 1, 128>}, {pipeline_mode = #tpu.pipeline_mode<synchronous>, transform_indices = @transform_5, window_bounds = array<i64: 1, 128>}, {pipeline_mode = #tpu.pipeline_mode<synchronous>, transform_indices = @transform_6, window_bounds = array<i64: 1, 128>}, {transform_indices = @transform_7, window_bounds = array<i64: 16, 128>}]} {
    %c16_i32 = arith.constant 16 : i32
    %0 = arith.muli %arg1, %c16_i32 : i32
    %1 = tpu.assume_multiple %0, 16 : i32
    %c0_i32 = arith.constant 0 : i32
    %2 = arith.cmpi eq, %arg0, %c0_i32 : i32
    %c0_i32_0 = arith.constant 0 : i32
    %3 = arith.cmpi eq, %arg1, %c0_i32_0 : i32
    %4 = arith.andi %2, %3 : i1
    %5 = arith.extui %4 : i1 to i32
    %c0_i32_1 = arith.constant 0 : i32
    %6 = arith.cmpi ne, %5, %c0_i32_1 : i32
    scf.if %6 {
      %cst = arith.constant 0.000000e+00 : f32
      %13 = vector.broadcast %cst : f32 to vector<2x128xf32>
      %c0 = arith.constant 0 : index
      %c0_5 = arith.constant 0 : index
      %14 = vector.load %arg11[%c0, %c0_5] : memref<2x128xf32, #tpu.memory_space<vmem>>, vector<2x128xf32>
      tpu.vector_store %arg11[%c0, %c0_5], %13 {strides = array<i32>} : memref<2x128xf32, #tpu.memory_space<vmem>>, vector<2x128xf32>,
    } else {
    }
    %c0_i32_2 = arith.constant 0 : i32
    %7 = arith.cmpi eq, %arg0, %c0_i32_2 : i32
    %8 = arith.extui %7 : i1 to i32
    %c0_i32_3 = arith.constant 0 : i32
    %9 = arith.cmpi ne, %8, %c0_i32_3 : i32
    scf.if %9 {
      %c0 = arith.constant 0 : index
      %c0_5 = arith.constant 0 : index
      %13 = vector.load %arg2[%c0, %c0_5] : memref<16x256xbf16, #tpu.memory_space<vmem>>, vector<16x256xbf16>
      %c0_6 = arith.constant 0 : index
      %c0_7 = arith.constant 0 : index
      %14 = vector.load %arg3[%c0_6, %c0_7] : memref<256x512xbf16, #tpu.memory_space<vmem>>, vector<256x512xbf16>
      %cst = arith.constant dense<0.000000e+00> : vector<16x512xf32>
      %15 = tpu.matmul %13, %14, %cst {dimension_numbers = #tpu.dot_dimension_numbers<[1], [0], [0], [1], [0, 0, 1, 1], [], []>} : vector<16x256xbf16>, vector<256x512xbf16>, vector<16x512xf32> -> vector<16x512xf32>
      %c0_8 = arith.constant 0 : index
      %c0_9 = arith.constant 0 : index
      %16 = vector.load %arg4[%c0_8, %c0_9] : memref<1x512xf32, #tpu.memory_space<vmem>>, vector<1x512xf32>
      %17 = vector.broadcast %16 : vector<1x512xf32> to vector<16x512xf32>
      %18 = arith.addf %15, %17 : vector<16x512xf32>
      %cst_10 = arith.constant 0.000000e+00 : f32
      %19 = vector.broadcast %cst_10 : f32 to vector<16x512xf32>
      %20 = arith.cmpf ogt, %18, %19 : vector<16x512xf32>
      %cst_11 = arith.constant 0.00999999977 : f32
      %21 = vector.broadcast %cst_11 : f32 to vector<16x512xf32>
      %22 = arith.mulf %21, %18 : vector<16x512xf32>
      %23 = arith.select %20, %18, %22 : vector<16x512xi1>, vector<16x512xf32>
      %24 = arith.truncf %23 : vector<16x512xf32> to vector<16x512xbf16>
      %c0_12 = arith.constant 0 : index
      %c0_13 = arith.constant 0 : index
      %25 = vector.load %arg5[%c0_12, %c0_13] : memref<512x128xbf16, #tpu.memory_space<vmem>>, vector<512x128xbf16>
      %cst_14 = arith.constant dense<0.000000e+00> : vector<16x128xf32>
      %26 = tpu.matmul %24, %25, %cst_14 {dimension_numbers = #tpu.dot_dimension_numbers<[1], [0], [0], [1], [0, 0, 1, 1], [], []>} : vector<16x512xbf16>, vector<512x128xbf16>, vector<16x128xf32> -> vector<16x128xf32>
      %c0_15 = arith.constant 0 : index
      %c0_16 = arith.constant 0 : index
      %27 = vector.load %arg6[%c0_15, %c0_16] : memref<1x128xf32, #tpu.memory_space<vmem>>, vector<1x128xf32>
      %28 = vector.broadcast %27 : vector<1x128xf32> to vector<16x128xf32>
      %29 = arith.addf %26, %28 : vector<16x128xf32>
      %30 = arith.index_cast %1 : i32 to index
      %c0_17 = arith.constant 0 : index
      %31 = vector.load %arg10[%30, %c0_17] : memref<16x128xf32, #tpu.memory_space<vmem>>, vector<16x128xf32>
      tpu.vector_store %arg10[%30, %c0_17], %29 {strides = array<i32>} : memref<16x128xf32, #tpu.memory_space<vmem>>, vector<16x128xf32>,
      %c0_18 = arith.constant 0 : index
      %c0_19 = arith.constant 0 : index
      %32 = vector.load %arg11[%c0_18, %c0_19] : memref<2x128xf32, #tpu.memory_space<vmem>>, vector<2x128xf32>
      %cst_20 = arith.constant dense<0.000000e+00> : vector<128xf32>
      %33 = vector.multi_reduction <add>, %29, %cst_20 [0] : vector<16x128xf32> to vector<128xf32>
      %34 = vector.shape_cast %33 : vector<128xf32> to vector<1x128xf32>
      %35 = arith.mulf %29, %29 : vector<16x128xf32>
      %cst_21 = arith.constant dense<0.000000e+00> : vector<128xf32>
      %36 = vector.multi_reduction <add>, %35, %cst_21 [0] : vector<16x128xf32> to vector<128xf32>
      %37 = vector.shape_cast %36 : vector<128xf32> to vector<1x128xf32>
      %38 = tpu.concatenate %34, %37 in 0 : vector<1x128xf32>, vector<1x128xf32> -> vector<2x128xf32>
      %39 = arith.addf %32, %38 : vector<2x128xf32>
      %c0_22 = arith.constant 0 : index
      %c0_23 = arith.constant 0 : index
      %40 = vector.load %arg11[%c0_22, %c0_23] : memref<2x128xf32, #tpu.memory_space<vmem>>, vector<2x128xf32>
      tpu.vector_store %arg11[%c0_22, %c0_23], %39 {strides = array<i32>} : memref<2x128xf32, #tpu.memory_space<vmem>>, vector<2x128xf32>,
    } else {
    }
    %c1_i32 = arith.constant 1 : i32
    %10 = arith.cmpi eq, %arg0, %c1_i32 : i32
    %11 = arith.extui %10 : i1 to i32
    %c0_i32_4 = arith.constant 0 : i32
    %12 = arith.cmpi ne, %11, %c0_i32_4 : i32
    scf.if %12 {
      %c0 = arith.constant 0 : index
      %c0_5 = arith.constant 0 : index
      %13 = vector.load %arg11[%c0, %c0_5] : memref<2x128xf32, #tpu.memory_space<vmem>>, vector<2x128xf32>
      %c0_6 = arith.constant 0 : index
      %c0_7 = arith.constant 0 : index
      %14 = vector.load %arg7[%c0_6, %c0_7] : memref<1x128xf32, #tpu.memory_space<vmem>>, vector<1x128xf32>
      %c0_8 = arith.constant 0 : index
      %c0_9 = arith.constant 0 : index
      %15 = vector.load %arg8[%c0_8, %c0_9] : memref<1x128xf32, #tpu.memory_space<vmem>>, vector<1x128xf32>
      %16 = vector.extract_strided_slice %13 {offsets = [0, 0], sizes = [1, 128], strides = [1, 1]} : vector<2x128xf32> to vector<1x128xf32>
      %cst = arith.constant 6.250000e-02 : f32
      %17 = vector.broadcast %cst : f32 to vector<1x128xf32>
      %18 = arith.mulf %16, %17 : vector<1x128xf32>
      %19 = vector.extract_strided_slice %13 {offsets = [1, 0], sizes = [1, 128], strides = [1, 1]} : vector<2x128xf32> to vector<1x128xf32>
      %cst_10 = arith.constant 6.250000e-02 : f32
      %20 = vector.broadcast %cst_10 : f32 to vector<1x128xf32>
      %21 = arith.mulf %19, %20 : vector<1x128xf32>
      %22 = arith.mulf %18, %18 : vector<1x128xf32>
      %23 = arith.subf %21, %22 : vector<1x128xf32>
      %cst_11 = arith.constant 9.99999974E-6 : f32
      %24 = vector.broadcast %cst_11 : f32 to vector<1x128xf32>
      %25 = arith.addf %23, %24 : vector<1x128xf32>
      %26 = math.rsqrt %25 : vector<1x128xf32>
      %27 = arith.mulf %26, %14 : vector<1x128xf32>
      %28 = arith.mulf %18, %27 : vector<1x128xf32>
      %29 = arith.subf %15, %28 : vector<1x128xf32>
      %30 = arith.index_cast %1 : i32 to index
      %c0_12 = arith.constant 0 : index
      %31 = vector.load %arg10[%30, %c0_12] : memref<16x128xf32, #tpu.memory_space<vmem>>, vector<16x128xf32>
      %32 = vector.broadcast %27 : vector<1x128xf32> to vector<16x128xf32>
      %33 = arith.mulf %31, %32 : vector<16x128xf32>
      %34 = vector.broadcast %29 : vector<1x128xf32> to vector<16x128xf32>
      %35 = arith.addf %33, %34 : vector<16x128xf32>
      %c0_13 = arith.constant 0 : index
      %c0_14 = arith.constant 0 : index
      %36 = vector.load %arg9[%c0_13, %c0_14] : memref<16x128xf32, #tpu.memory_space<vmem>>, vector<16x128xf32>
      tpu.vector_store %arg9[%c0_13, %c0_14], %35 {strides = array<i32>} : memref<16x128xf32, #tpu.memory_space<vmem>>, vector<16x128xf32>,
    } else {
    }
    return
  }
  func.func @transform_0(%arg0: i32, %arg1: i32) -> (i32, i32) {
    %c1_i32 = arith.constant 1 : i32
    %0 = arith.subi %c1_i32, %arg0 : i32
    %1 = arith.muli %arg1, %0 : i32
    %c0_i32 = arith.constant 0 : i32
    %c0_i32_0 = arith.constant 0 : i32
    return %1, %c0_i32 : i32, i32
  }
  func.func @transform_1(%arg0: i32, %arg1: i32) -> (i32, i32) {
    %c0_i32 = arith.constant 0 : i32
    %c0_i32_0 = arith.constant 0 : i32
    %c0_i32_1 = arith.constant 0 : i32
    return %c0_i32, %c0_i32_0 : i32, i32
  }
  func.func @transform_2(%arg0: i32, %arg1: i32) -> (i32, i32) {
    %c0_i32 = arith.constant 0 : i32
    %c0_i32_0 = arith.constant 0 : i32
    %c0_i32_1 = arith.constant 0 : i32
    return %c0_i32, %c0_i32_0 : i32, i32
  }
  func.func @transform_3(%arg0: i32, %arg1: i32) -> (i32, i32) {
    %c0_i32 = arith.constant 0 : i32
    %c0_i32_0 = arith.constant 0 : i32
    %c0_i32_1 = arith.constant 0 : i32
    return %c0_i32, %c0_i32_0 : i32, i32
  }
  func.func @transform_4(%arg0: i32, %arg1: i32) -> (i32, i32) {
    %c0_i32 = arith.constant 0 : i32
    %c0_i32_0 = arith.constant 0 : i32
    %c0_i32_1 = arith.constant 0 : i32
    return %c0_i32, %c0_i32_0 : i32, i32
  }
  func.func @transform_5(%arg0: i32, %arg1: i32) -> (i32, i32) {
    %c0_i32 = arith.constant 0 : i32
    %c0_i32_0 = arith.constant 0 : i32
    %c0_i32_1 = arith.constant 0 : i32
    return %c0_i32, %c0_i32_0 : i32, i32
  }
  func.func @transform_6(%arg0: i32, %arg1: i32) -> (i32, i32) {
    %c0_i32 = arith.constant 0 : i32
    %c0_i32_0 = arith.constant 0 : i32
    %c0_i32_1 = arith.constant 0 : i32
    return %c0_i32, %c0_i32_0 : i32, i32
  }
  func.func @transform_7(%arg0: i32, %arg1: i32) -> (i32, i32) {
    %0 = arith.muli %arg1, %arg0 : i32
    %c0_i32 = arith.constant 0 : i32
    %c0_i32_0 = arith.constant 0 : i32
    return %0, %c0_i32 : i32, i32
  }
}

</mosaic_0001>

<llo_original>
// kernel: tpu_custom_call.1
$region0: #{tpu_custom_call.1}
  #allocation0 [shape = 'u32[]', space=smem, size = 0x4, offset = 0x4, fixed_abs, tag = 'smem constant byte address 0x4 - core index']
  #allocation1 [shape = 'u32[144,128]{1,0:T(1,128)}', space=vmem, size = 0x12000, scoped, tag = 'internal scratch']
  #allocation2 [shape = 'f32[16,128]{1,0:T(8,128)}', space=vmem, size = 0x2000, scoped, tag = 'scratch operand']
  #allocation3 [shape = 'f32[2,128]{1,0:T(2,128)}', space=vmem, size = 0x400, scoped, tag = 'scratch operand']
  %s0 = inlined_call_operand.hbm [shape: bf16[16,256], index: 0, kind: input, shape index: {}]
  %s1 = inlined_call_operand.hbm [shape: bf16[256,512], index: 1, kind: input, shape index: {}]
  %s2 = inlined_call_operand.hbm [shape: f32[1,512], index: 2, kind: input, shape index: {}]
  %s3 = inlined_call_operand.hbm [shape: bf16[512,128], index: 3, kind: input, shape index: {}]
  %s4 = inlined_call_operand.vmem [shape: f32[1,128], index: 4, kind: input, shape index: {}]
  %s5 = inlined_call_operand.vmem [shape: f32[1,128], index: 5, kind: input, shape index: {}]
  %s6 = inlined_call_operand.vmem [shape: f32[1,128], index: 6, kind: input, shape index: {}]
  %s7 = inlined_call_operand.hbm [shape: f32[16,128], index: 7, kind: output, shape index: {}]
  %s8 = sld [smem:[#allocation0]]
  $region89: #{tpu_custom_call.1} parent=0
    _
  %s10 = ssub.s32 1, %s8
  %s11 = scalar_select 0, %s10, %s8
  $region1: #{tpu_custom_call.1} parent=0
    #allocation4 [shape = 'u8[16384]{0}', space=vmem, size = 0x4000, scoped, tag = 'input window, operand 0']
    #allocation5 [shape = 's32[2]{0}', space=sflag, size = 0x8, scoped, tag = 'scoped memory for tpu_custom_call.1']
    #allocation6 [shape = 's32[2]{0}', space=sflag, size = 0x8, scoped, tag = 'scoped memory for tpu_custom_call.1']
    #allocation7 [shape = 'u8[262144]{0}', space=vmem, size = 0x40000, scoped, tag = 'input window, operand 1, single buffered']
    #allocation8 [shape = 's32[1]{0}', space=sflag, size = 0x4, scoped, tag = 'scoped memory for tpu_custom_call.1']
    #allocation9 [shape = 'u8[2048]{0}', space=vmem, size = 0x800, scoped, tag = 'input window, operand 2, single buffered']
    #allocation10 [shape = 'u8[131072]{0}', space=vmem, size = 0x20000, scoped, tag = 'input window, operand 3, single buffered']
    #allocation11 [shape = 's32[1]{0}', space=sflag, size = 0x4, scoped, tag = 'scoped memory for tpu_custom_call.1']
    #allocation12 [shape = 'u8[16384]{0}', space=vmem, size = 0x4000, scoped, tag = 'output window, operand 0']
    %12 = vsyncpa [#allocation5], 0
    %s13 = scalar_lea.sflag [#allocation5], 1
    %14 = vsyncpa %s13, 0
    %15 = vsyncpa [#allocation8], 0
    %16 = vsyncpa [#allocation11], 0
    %17 = vsyncpa [#allocation6], 0
    %s18 = scalar_lea.sflag [#allocation6], 1
    %19 = vsyncpa %s18, 0
    loop: start=0, step=1, limit=4
    $region2: #{tpu_custom_call.1} parent=1 // loop_pre_header
      _
    $region3: #{tpu_custom_call.1} parent=1 // loop_header
      %s21 = sphi 0, %s25
      %p22 = scmp.ge.s32.totalorder %s21, 4
      %s28 = sphi 0, %s40
      %s29 = sphi 0, %s36
      %s30 = sphi 0, %s28
      %s31 = sphi 0, %s29
      %s32 = sphi 0, %s30
      %s33 = sphi 0, %s31
      %s47 = sphi 0, %s49
      %s50 = sphi 0, %s47
      %s51 = sphi 0, %s50
      %s67 = sphi 0, %s51
      %s71 = sphi 0, %s71
      %s73 = sphi 0, %s71
      %s74 = sphi 0, %s73
      %s88 = sphi 0, %s74
      %s92 = sphi 0, %s92
      %s94 = sphi 0, %s92
      %s95 = sphi 0, %s94
      %s109 = sphi 0, %s95
      %s113 = sphi 0, %s113
      %s115 = sphi 0, %s113
      %s116 = sphi 0, %s115
      %s130 = sphi 0, %s116
      %s134 = sphi 0, %s134
      %s136 = sphi 0, %s134
      %s137 = sphi 0, %s136
      %s151 = sphi 0, %s137
      %s155 = sphi 0, %s155
      %s157 = sphi 0, %s155
      %s158 = sphi 0, %s157
      %s172 = sphi 0, %s158
      %s176 = sphi 0, %s176
      %s178 = sphi 0, %s176
      %s179 = sphi 0, %s178
      %s193 = sphi 0, %s179
      %s201 = sphi 0, %s203
      %s204 = sphi 0, %s201
      %s205 = sphi 0, %s204
      %s221 = sphi 0, %s205
    $region4: #{tpu_custom_call.1} parent=1 // loop_header_branch
      %24 = sbr.rel (%p22) target = $region8
    $region5: #{tpu_custom_call.1} parent=1 // loop_body
      %s26 = ssub.s32 %s21, 1
      %s27 = ssub.s32 %s21, 2
      %s34 = sadd.s32 1, %s29
      %p35 = scmp.ge.s32.totalorder %s34, 1
      %s36 = scalar_select %p35, 0, %s34
      %s37 = sadd.s32 1, %s28
      %s38 = scalar_select %p35, %s37, %s28
      %p39 = scmp.ge.s32.totalorder %s38, 2
      %s40 = scalar_select %p39, 0, %s38
      %s41 = ssub.s32 1, %s28
      %s42 = smul.u32 %s29, %s41
      %s43 = ssub.s32 1, %s40
      %s44 = smul.u32 %s36, %s43
      %s45 = ssub.s32 %s42, %s44
      %p46 = scmp.eq.s32.totalorder %s45, 0
      %s48 = sadd.s32 %s47, 1
      %s49 = scalar_select %p46, %s47, %s48
      %p52 = pneg %p46
      %p53 = scmp.eq.s32.totalorder %s21, 1
      %p54 = por %p52, %p53
      %p55 = scmp.ne.s32.totalorder %s47, %s50
      %p56 = scmp.eq.s32.totalorder %s21, 0
      %p57 = por %p55, %p56
      %p58 = scmp.ne.s32.totalorder %s47, %s50
      %p59 = scmp.eq.s32.totalorder %s26, 1
      %p60 = por %p58, %p59
      %p61 = scmp.ne.s32.totalorder %s50, %s51
      %p62 = scmp.eq.s32.totalorder %s26, 0
      %p63 = por %p61, %p62
      %p64 = scmp.ne.s32.totalorder %s50, %s51
      %p65 = scmp.eq.s32.totalorder %s27, 1
      %p66 = por %p64, %p65
      %p68 = scmp.ne.s32.totalorder %s51, %s67
      %p69 = scmp.eq.s32.totalorder %s27, 0
      %p70 = por %p68, %p69
      %s72 = sadd.s32 %s71, 1
      %p75 = scmp.eq.s32.totalorder %s21, 1
      %p76 = scmp.ne.s32.totalorder %s71, %s73
      %p77 = scmp.eq.s32.totalorder %s21, 0
      %p78 = por %p76, %p77
      %p79 = scmp.ne.s32.totalorder %s71, %s73
      %p80 = scmp.eq.s32.totalorder %s26, 1
      %p81 = por %p79, %p80
      %p82 = scmp.ne.s32.totalorder %s73, %s74
      %p83 = scmp.eq.s32.totalorder %s26, 0
      %p84 = por %p82, %p83
      %p85 = scmp.ne.s32.totalorder %s73, %s74
      %p86 = scmp.eq.s32.totalorder %s27, 1
      %p87 = por %p85, %p86
      %p89 = scmp.ne.s32.totalorder %s74, %s88
      %p90 = scmp.eq.s32.totalorder %s27, 0
      %p91 = por %p89, %p90
      %s93 = sadd.s32 %s92, 1
      %p96 = scmp.eq.s32.totalorder %s21, 1
      %p97 = scmp.ne.s32.totalorder %s92, %s94
      %p98 = scmp.eq.s32.totalorder %s21, 0
      %p99 = por %p97, %p98
      %p100 = scmp.ne.s32.totalorder %s92, %s94
      %p101 = scmp.eq.s32.totalorder %s26, 1
      %p102 = por %p100, %p101
      %p103 = scmp.ne.s32.totalorder %s94, %s95
      %p104 = scmp.eq.s32.totalorder %s26, 0
      %p105 = por %p103, %p104
      %p106 = scmp.ne.s32.totalorder %s94, %s95
      %p107 = scmp.eq.s32.totalorder %s27, 1
      %p108 = por %p106, %p107
      %p110 = scmp.ne.s32.totalorder %s95, %s109
      %p111 = scmp.eq.s32.totalorder %s27, 0
      %p112 = por %p110, %p111
      %s114 = sadd.s32 %s113, 1
      %p117 = scmp.eq.s32.totalorder %s21, 1
      %p118 = scmp.ne.s32.totalorder %s113, %s115
      %p119 = scmp.eq.s32.totalorder %s21, 0
      %p120 = por %p118, %p119
      %p121 = scmp.ne.s32.totalorder %s113, %s115
      %p122 = scmp.eq.s32.totalorder %s26, 1
      %p123 = por %p121, %p122
      %p124 = scmp.ne.s32.totalorder %s115, %s116
      %p125 = scmp.eq.s32.totalorder %s26, 0
      %p126 = por %p124, %p125
      %p127 = scmp.ne.s32.totalorder %s115, %s116
      %p128 = scmp.eq.s32.totalorder %s27, 1
      %p129 = por %p127, %p128
      %p131 = scmp.ne.s32.totalorder %s116, %s130
      %p132 = scmp.eq.s32.totalorder %s27, 0
      %p133 = por %p131, %p132
      %s135 = sadd.s32 %s134, 1
      %p138 = scmp.eq.s32.totalorder %s21, 1
      %p139 = scmp.ne.s32.totalorder %s134, %s136
      %p140 = scmp.eq.s32.totalorder %s21, 0
      %p141 = por %p139, %p140
      %p142 = scmp.ne.s32.totalorder %s134, %s136
      %p143 = scmp.eq.s32.totalorder %s26, 1
      %p144 = por %p142, %p143
      %p145 = scmp.ne.s32.totalorder %s136, %s137
      %p146 = scmp.eq.s32.totalorder %s26, 0
      %p147 = por %p145, %p146
      %p148 = scmp.ne.s32.totalorder %s136, %s137
      %p149 = scmp.eq.s32.totalorder %s27, 1
      %p150 = por %p148, %p149
      %p152 = scmp.ne.s32.totalorder %s137, %s151
      %p153 = scmp.eq.s32.totalorder %s27, 0
      %p154 = por %p152, %p153
      %s156 = sadd.s32 %s155, 1
      %p159 = scmp.eq.s32.totalorder %s21, 1
      %p160 = scmp.ne.s32.totalorder %s155, %s157
      %p161 = scmp.eq.s32.totalorder %s21, 0
      %p162 = por %p160, %p161
      %p163 = scmp.ne.s32.totalorder %s155, %s157
      %p164 = scmp.eq.s32.totalorder %s26, 1
      %p165 = por %p163, %p164
      %p166 = scmp.ne.s32.totalorder %s157, %s158
      %p167 = scmp.eq.s32.totalorder %s26, 0
      %p168 = por %p166, %p167
      %p169 = scmp.ne.s32.totalorder %s157, %s158
      %p170 = scmp.eq.s32.totalorder %s27, 1
      %p171 = por %p169, %p170
      %p173 = scmp.ne.s32.totalorder %s158, %s172
      %p174 = scmp.eq.s32.totalorder %s27, 0
      %p175 = por %p173, %p174
      %s177 = sadd.s32 %s176, 1
      %p180 = scmp.eq.s32.totalorder %s21, 1
      %p181 = scmp.ne.s32.totalorder %s176, %s178
      %p182 = scmp.eq.s32.totalorder %s21, 0
      %p183 = por %p181, %p182
      %p184 = scmp.ne.s32.totalorder %s176, %s178
      %p185 = scmp.eq.s32.totalorder %s26, 1
      %p186 = por %p184, %p185
      %p187 = scmp.ne.s32.totalorder %s178, %s179
      %p188 = scmp.eq.s32.totalorder %s26, 0
      %p189 = por %p187, %p188
      %p190 = scmp.ne.s32.totalorder %s178, %s179
      %p191 = scmp.eq.s32.totalorder %s27, 1
      %p192 = por %p190, %p191
      %p194 = scmp.ne.s32.totalorder %s179, %s193
      %p195 = scmp.eq.s32.totalorder %s27, 0
      %p196 = por %p194, %p195
      %s197 = smul.u32 %s29, %s28
      %s198 = smul.u32 %s36, %s40
      %s199 = ssub.s32 %s197, %s198
      %p200 = scmp.eq.s32.totalorder %s199, 0
      %s202 = sadd.s32 %s201, 1
      %s203 = scalar_select %p200, %s201, %s202
      %p206 = pneg %p200
      %p207 = scmp.eq.s32.totalorder %s21, 1
      %p208 = por %p206, %p207
      %p209 = scmp.ne.s32.totalorder %s201, %s204
      %p210 = scmp.eq.s32.totalorder %s21, 0
      %p211 = por %p209, %p210
      %p212 = scmp.ne.s32.totalorder %s201, %s204
      %p213 = scmp.eq.s32.totalorder %s26, 1
      %p214 = por %p212, %p213
      %p215 = scmp.ne.s32.totalorder %s204, %s205
      %p216 = scmp.eq.s32.totalorder %s26, 0
      %p217 = por %p215, %p216
      %p218 = scmp.ne.s32.totalorder %s204, %s205
      %p219 = scmp.eq.s32.totalorder %s27, 1
      %p220 = por %p218, %p219
      %p222 = scmp.ne.s32.totalorder %s205, %s221
      %p223 = scmp.eq.s32.totalorder %s27, 0
      %p224 = por %p222, %p223
      %p225 = scmp.le.s32.totalorder 1, %s21
      %p226 = scmp.lt.s32.totalorder %s21, 3
      %p227 = pnand %p225, %p226
      %p228 = pneg %p227
      // Predicated region
      $region9: #{tpu_custom_call.1} parent=5 // pred_check
        _
      $region10: #{tpu_custom_call.1} parent=5 // pred_check_branch
        %230 = sbr.rel (%p227) target = $region12
      $region11: #{tpu_custom_call.1} parent=5 // pred_region
        %s231 = ssub.s32 %s21, 1
        // Predicated region
        $region13: #{tpu_custom_call.1} parent=11 // pred_check
          %p232 = pneg %p84
        $region14: #{tpu_custom_call.1} parent=11 // pred_check_branch
          %234 = sbr.rel (%p232) target = $region16
        $region15: #{tpu_custom_call.1} parent=11 // pred_region
          %s236 = ssub.s32 8192, 8192
          %237 = vsyncadd [#allocation8], %s236
          %s238 = sshll.u32 [#allocation7], 4
          %s239 = int_to_ptr.vmem [resolvable:$true] %s238
          %244 = dma.hbm_to_vmem [thread:$0]  %s1, 8192, %s239, [#allocation8], 256, 256, 16
        $region16: #{tpu_custom_call.1} parent=11 // pred_fallthru
          _
        // Predicated region
        $region17: #{tpu_custom_call.1} parent=11 // pred_check
          %p245 = pneg %p105
        $region18: #{tpu_custom_call.1} parent=11 // pred_check_branch
          %247 = sbr.rel (%p245) target = $region20
        $region19: #{tpu_custom_call.1} parent=11 // pred_region
          %s249 = ssub.s32 64, 64
          %250 = vsyncadd [#allocation8], %s249
          %s252 = sshll.u32 [#allocation9], 4
          %s253 = int_to_ptr.vmem [resolvable:$true] %s252
          %255 = dma.hbm_to_vmem [thread:$0]  %s2, 64, %s253, [#allocation8]
        $region20: #{tpu_custom_call.1} parent=11 // pred_fallthru
          _
        // Predicated region
        $region21: #{tpu_custom_call.1} parent=11 // pred_check
          %p256 = pneg %p126
        $region22: #{tpu_custom_call.1} parent=11 // pred_check_branch
          %258 = sbr.rel (%p256) target = $region24
        $region23: #{tpu_custom_call.1} parent=11 // pred_region
          %s260 = ssub.s32 4096, 4096
          %261 = vsyncadd [#allocation11], %s260
          %s262 = sshll.u32 [#allocation10], 4
          %s263 = int_to_ptr.vmem [resolvable:$true] %s262
          %268 = dma.hbm_to_vmem [thread:$0]  %s3, 4096, %s263, [#allocation11], 64, 64, 4
        $region24: #{tpu_custom_call.1} parent=11 // pred_fallthru
          _
        // Predicated region
        $region25: #{tpu_custom_call.1} parent=11 // pred_check
          %p269 = pneg %p147
        $region26: #{tpu_custom_call.1} parent=11 // pred_check_branch
          %271 = sbr.rel (%p269) target = $region28
        $region27: #{tpu_custom_call.1} parent=11 // pred_region
          _
        $region28: #{tpu_custom_call.1} parent=11 // pred_fallthru
          _
        // Predicated region
        $region29: #{tpu_custom_call.1} parent=11 // pred_check
          %p272 = pneg %p168
        $region30: #{tpu_custom_call.1} parent=11 // pred_check_branch
          %274 = sbr.rel (%p272) target = $region32
        $region31: #{tpu_custom_call.1} parent=11 // pred_region
          _
        $region32: #{tpu_custom_call.1} parent=11 // pred_fallthru
          _
        // Predicated region
        $region33: #{tpu_custom_call.1} parent=11 // pred_check
          %p275 = pneg %p189
        $region34: #{tpu_custom_call.1} parent=11 // pred_check_branch
          %277 = sbr.rel (%p275) target = $region36
        $region35: #{tpu_custom_call.1} parent=11 // pred_region
          _
        $region36: #{tpu_custom_call.1} parent=11 // pred_fallthru
          _
      $region12: #{tpu_custom_call.1} parent=5 // pred_fallthru
        _
      %p278 = scmp.lt.s32.totalorder %s21, 2
      // Predicated region
      $region37: #{tpu_custom_call.1} parent=5 // pred_check
        %p279 = pneg %p278
      $region38: #{tpu_custom_call.1} parent=5 // pred_check_branch
        %281 = sbr.rel (%p279) target = $region40
      $region39: #{tpu_custom_call.1} parent=5 // pred_region
        // Predicated region
        $region41: #{tpu_custom_call.1} parent=39 // pred_check
          %p282 = pneg %p57
        $region42: #{tpu_custom_call.1} parent=39 // pred_check_branch
          %284 = sbr.rel (%p282) target = $region44
        $region43: #{tpu_custom_call.1} parent=39 // pred_region
          %s285 = sand.u32 %s47, 1
          %s286 = scalar_lea.sflag [#allocation5], %s285
          %s287 = sand.u32 %s47, 1
          %s288 = smul.addr %s287, 16
          %s289 = scalar_lea.vmem [#allocation4], %s288
          %s290 = ssub.s32 1, %s28
          %s291 = smul.u32 %s29, %s290
          %s292 = smul.u32 2, %s291
          %s294 = ssub.s32 256, 256
          %295 = vsyncadd %s286, %s294
          %s296 = smul.addr %s292, 2
          %s297 = smul.addr %s296, 64
          %s298 = scalar_lea.hbm %s0, %s297
          %s299 = sshll.u32 %s289, 4
          %s300 = int_to_ptr.vmem [resolvable:$true] %s299
          %305 = dma.hbm_to_vmem [thread:$0]  %s298, 256, %s300, %s286, 128, 128, 8
        $region44: #{tpu_custom_call.1} parent=39 // pred_fallthru
          _
      $region40: #{tpu_custom_call.1} parent=5 // pred_fallthru
        _
      %p306 = scmp.le.s32.totalorder 1, %s21
      %p307 = scmp.lt.s32.totalorder %s21, 3
      %p308 = pnand %p306, %p307
      %p309 = pneg %p308
      // Predicated region
      $region45: #{tpu_custom_call.1} parent=5 // pred_check
        _
      $region46: #{tpu_custom_call.1} parent=5 // pred_check_branch
        %311 = sbr.rel (%p308) target = $region48
      $region47: #{tpu_custom_call.1} parent=5 // pred_region
        %s312 = ssub.s32 %s21, 1
        %s313 = sand.u32 %s50, 1
        %s314 = scalar_lea.sflag [#allocation5], %s313
        %s315 = sand.u32 %s50, 1
        %s316 = smul.addr %s315, 16
        %s317 = scalar_lea.vmem [#allocation4], %s316
        // Predicated region
        $region49: #{tpu_custom_call.1} parent=47 // pred_check
          %p318 = pneg %p63
        $region50: #{tpu_custom_call.1} parent=47 // pred_check_branch
          %320 = sbr.rel (%p318) target = $region52
        $region51: #{tpu_custom_call.1} parent=47 // pred_region
          %321 = dma.done %s314, 256
        $region52: #{tpu_custom_call.1} parent=47 // pred_fallthru
          _
        // Predicated region
        $region53: #{tpu_custom_call.1} parent=47 // pred_check
          %p322 = pneg %p84
        $region54: #{tpu_custom_call.1} parent=47 // pred_check_branch
          %324 = sbr.rel (%p322) target = $region56
        $region55: #{tpu_custom_call.1} parent=47 // pred_region
          %325 = dma.done [#allocation8], 8192
        $region56: #{tpu_custom_call.1} parent=47 // pred_fallthru
          _
        // Predicated region
        $region57: #{tpu_custom_call.1} parent=47 // pred_check
          %p326 = pneg %p105
        $region58: #{tpu_custom_call.1} parent=47 // pred_check_branch
          %328 = sbr.rel (%p326) target = $region60
        $region59: #{tpu_custom_call.1} parent=47 // pred_region
          %329 = dma.done [#allocation8], 64
        $region60: #{tpu_custom_call.1} parent=47 // pred_fallthru
          _
        // Predicated region
        $region61: #{tpu_custom_call.1} parent=47 // pred_check
          %p330 = pneg %p126
        $region62: #{tpu_custom_call.1} parent=47 // pred_check_branch
          %332 = sbr.rel (%p330) target = $region64
        $region63: #{tpu_custom_call.1} parent=47 // pred_region
          %333 = dma.done [#allocation11], 4096
        $region64: #{tpu_custom_call.1} parent=47 // pred_fallthru
          _
        %s334 = sand.u32 %s50, 1
        %s335 = scalar_lea.sflag [#allocation5], %s334
        %s336 = sand.u32 %s50, 1
        %s337 = smul.addr %s336, 16
        %s338 = scalar_lea.vmem [#allocation4], %s337
        %p339 = pneg %p63
        %p340 = pneg %p60
        %p341 = pneg %p84
        %p342 = pneg %p81
        %p343 = pneg %p105
        %p344 = pneg %p102
        %p345 = pneg %p126
        %p346 = pneg %p123
        %p347 = pneg %p147
        %p348 = pneg %p144
        %p349 = pneg %p168
        %p350 = pneg %p165
        %p351 = pneg %p189
        %p352 = pneg %p186
        %p353 = pneg %p217
        %p354 = pneg %p214
        %s355 = sand.u32 %s204, 1
        %s356 = scalar_lea.sflag [#allocation6], %s355
        %s357 = sand.u32 %s204, 1
        %s358 = smul.addr %s357, 16
        %s359 = scalar_lea.vmem [#allocation12], %s358
        %s360 = ssub.s32 1, %s30
        %s361 = smul.u32 %s31, %s360
        %s362 = smul.u32 2, %s361
        %s363 = smul.u32 %s31, %s30
        %s364 = smul.u32 2, %s363
        %s366 = smul.u32 %s31, 16
        %p367 = scmp.eq.s32.totalorder %s30, 0
        %p368 = scmp.eq.s32.totalorder %s31, 0
        %p369 = pnand %p367, %p368
        %p370 = pneg %p369
        // Predicated region
        $region65: #{tpu_custom_call.1} parent=47 // pred_check
          _
        $region66: #{tpu_custom_call.1} parent=47 // pred_check_branch
          %372 = sbr.rel (%p369) target = $region68
        $region67: #{tpu_custom_call.1} parent=47 // pred_region
          %373 = vst [vmem:[#allocation3] sm:$0x3] 0.0
        $region68: #{tpu_custom_call.1} parent=47 // pred_fallthru
          _
        // Predicated region
        $region69: #{tpu_custom_call.1} parent=47 // pred_check
          %p374 = pneg %p367
        $region70: #{tpu_custom_call.1} parent=47 // pred_check_branch
          %376 = sbr.rel (%p374) target = $region72
        $region71: #{tpu_custom_call.1} parent=47 // pred_region
          %v377 = vld [vmem:[%s317] sm:$0xff]
          %v378 = vld [vmem:[%s317 + $0x8] sm:$0xff]
          %v379 = vld [vmem:[#allocation7] sm:$0xff]
          %v380 = vld [vmem:[#allocation7 + $0x8] sm:$0xff]
          %v381 = vld [vmem:[#allocation7 + $0x10] sm:$0xff]
          %v382 = vld [vmem:[#allocation7 + $0x18] sm:$0xff]
          %v383 = vld [vmem:[#allocation7 + $0x20] sm:$0xff]
          %v384 = vld [vmem:[#allocation7 + $0x28] sm:$0xff]
          %v385 = vld [vmem:[#allocation7 + $0x30] sm:$0xff]
          %v386 = vld [vmem:[#allocation7 + $0x38] sm:$0xff]
          %v387 = vld [vmem:[#allocation7 + $0x40] sm:$0xff]
          %v388 = vld [vmem:[#allocation7 + $0x48] sm:$0xff]
          %v389 = vld [vmem:[#allocation7 + $0x50] sm:$0xff]
          %v390 = vld [vmem:[#allocation7 + $0x58] sm:$0xff]
          %v391 = vld [vmem:[#allocation7 + $0x60] sm:$0xff]
          %v392 = vld [vmem:[#allocation7 + $0x68] sm:$0xff]
          %v393 = vld [vmem:[#allocation7 + $0x70] sm:$0xff]
          %v394 = vld [vmem:[#allocation7 + $0x78] sm:$0xff]
          %v395 = vld [vmem:[#allocation7 + $0x80] sm:$0xff]
          %v396 = vld [vmem:[#allocation7 + $0x88] sm:$0xff]
          %v397 = vld [vmem:[#allocation7 + $0x90] sm:$0xff]
          %v398 = vld [vmem:[#allocation7 + $0x98] sm:$0xff]
          %v399 = vld [vmem:[#allocation7 + $0xa0] sm:$0xff]
          %v400 = vld [vmem:[#allocation7 + $0xa8] sm:$0xff]
          %v401 = vld [vmem:[#allocation7 + $0xb0] sm:$0xff]
          %v402 = vld [vmem:[#allocation7 + $0xb8] sm:$0xff]
          %v403 = vld [vmem:[#allocation7 + $0xc0] sm:$0xff]
          %v404 = vld [vmem:[#allocation7 + $0xc8] sm:$0xff]
          %v405 = vld [vmem:[#allocation7 + $0xd0] sm:$0xff]
          %v406 = vld [vmem:[#allocation7 + $0xd8] sm:$0xff]
          %v407 = vld [vmem:[#allocation7 + $0xe0] sm:$0xff]
          %v408 = vld [vmem:[#allocation7 + $0xe8] sm:$0xff]
          %v409 = vld [vmem:[#allocation7 + $0xf0] sm:$0xff]
          %v410 = vld [vmem:[#allocation7 + $0xf8] sm:$0xff]
          %v411 = vld [vmem:[#allocation7 + $0x100] sm:$0xff]
          %v412 = vld [vmem:[#allocation7 + $0x108] sm:$0xff]
          %v413 = vld [vmem:[#allocation7 + $0x110] sm:$0xff]
          %v414 = vld [vmem:[#allocation7 + $0x118] sm:$0xff]
          %v415 = vld [vmem:[#allocation7 + $0x120] sm:$0xff]
          %v416 = vld [vmem:[#allocation7 + $0x128] sm:$0xff]
          %v417 = vld [vmem:[#allocation7 + $0x130] sm:$0xff]
          %v418 = vld [vmem:[#allocation7 + $0x138] sm:$0xff]
          %v419 = vld [vmem:[#allocation7 + $0x140] sm:$0xff]
          %v420 = vld [vmem:[#allocation7 + $0x148] sm:$0xff]
          %v421 = vld [vmem:[#allocation7 + $0x150] sm:$0xff]
          %v422 = vld [vmem:[#allocation7 + $0x158] sm:$0xff]
          %v423 = vld [vmem:[#allocation7 + $0x160] sm:$0xff]
          %v424 = vld [vmem:[#allocation7 + $0x168] sm:$0xff]
          %v425 = vld [vmem:[#allocation7 + $0x170] sm:$0xff]
          %v426 = vld [vmem:[#allocation7 + $0x178] sm:$0xff]
          %v427 = vld [vmem:[#allocation7 + $0x180] sm:$0xff]
          %v428 = vld [vmem:[#allocation7 + $0x188] sm:$0xff]
          %v429 = vld [vmem:[#allocation7 + $0x190] sm:$0xff]
          %v430 = vld [vmem:[#allocation7 + $0x198] sm:$0xff]
          %v431 = vld [vmem:[#allocation7 + $0x1a0] sm:$0xff]
          %v432 = vld [vmem:[#allocation7 + $0x1a8] sm:$0xff]
          %v433 = vld [vmem:[#allocation7 + $0x1b0] sm:$0xff]
          %v434 = vld [vmem:[#allocation7 + $0x1b8] sm:$0xff]
          %v435 = vld [vmem:[#allocation7 + $0x1c0] sm:$0xff]
          %v436 = vld [vmem:[#allocation7 + $0x1c8] sm:$0xff]
          %v437 = vld [vmem:[#allocation7 + $0x1d0] sm:$0xff]
          %v438 = vld [vmem:[#allocation7 + $0x1d8] sm:$0xff]
          %v439 = vld [vmem:[#allocation7 + $0x1e0] sm:$0xff]
          %v440 = vld [vmem:[#allocation7 + $0x1e8] sm:$0xff]
          %v441 = vld [vmem:[#allocation7 + $0x1f0] sm:$0xff]
          %v442 = vld [vmem:[#allocation7 + $0x1f8] sm:$0xff]
          %v443 = vld [vmem:[#allocation9] sm:$0xf]
          %v445 = vlaneseq
          %v446 = vshrl.u32 %v445, 7
          %v447 = vsub.s32 0, %v446
          %v448 = vrot.slane %v443, %v447
          %v449 = vlaneseq
          %v450 = vshrl.u32 %v449, 7
          %v451 = vsub.s32 1, %v450
          %v452 = vrot.slane %v443, %v451
          %v453 = vlaneseq
          %v454 = vshrl.u32 %v453, 7
          %v455 = vsub.s32 2, %v454
          %v456 = vrot.slane %v443, %v455
          %v457 = vlaneseq
          %v458 = vshrl.u32 %v457, 7
          %v459 = vsub.s32 3, %v458
          %v460 = vrot.slane %v443, %v459
          %v467 = vunpack.c.l.b16 %v377
          %v468 = vunpack.c.h.b16 %v377
          %v469 = vunpack.c.l.b16 %v378
          %v470 = vunpack.c.h.b16 %v378
          %v471 = vpack.c.b16 %v469, %v467
          %v472 = vpack.c.b16 %v470, %v468
          %v539 = vunpack.c.l.b16 %v379
          %v540 = vunpack.c.h.b16 %v379
          %v541 = vunpack.c.l.b16 %v380
          %v542 = vunpack.c.h.b16 %v380
          %v543 = vunpack.c.l.b16 %v381
          %v544 = vunpack.c.h.b16 %v381
          %v545 = vunpack.c.l.b16 %v382
          %v546 = vunpack.c.h.b16 %v382
          %v547 = vunpack.c.l.b16 %v383
          %v548 = vunpack.c.h.b16 %v383
          %v549 = vunpack.c.l.b16 %v384
          %v550 = vunpack.c.h.b16 %v384
          %v551 = vunpack.c.l.b16 %v385
          %v552 = vunpack.c.h.b16 %v385
          %v553 = vunpack.c.l.b16 %v386
          %v554 = vunpack.c.h.b16 %v386
          %v555 = vunpack.c.l.b16 %v387
          %v556 = vunpack.c.h.b16 %v387
          %v557 = vunpack.c.l.b16 %v388
          %v558 = vunpack.c.h.b16 %v388
          %v559 = vunpack.c.l.b16 %v389
          %v560 = vunpack.c.h.b16 %v389
          %v561 = vunpack.c.l.b16 %v390
          %v562 = vunpack.c.h.b16 %v390
          %v563 = vunpack.c.l.b16 %v391
          %v564 = vunpack.c.h.b16 %v391
          %v565 = vunpack.c.l.b16 %v392
          %v566 = vunpack.c.h.b16 %v392
          %v567 = vunpack.c.l.b16 %v393
          %v568 = vunpack.c.h.b16 %v393
          %v569 = vunpack.c.l.b16 %v394
          %v570 = vunpack.c.h.b16 %v394
          %v571 = vunpack.c.l.b16 %v395
          %v572 = vunpack.c.h.b16 %v395
          %v573 = vunpack.c.l.b16 %v396
          %v574 = vunpack.c.h.b16 %v396
          %v575 = vunpack.c.l.b16 %v397
          %v576 = vunpack.c.h.b16 %v397
          %v577 = vunpack.c.l.b16 %v398
          %v578 = vunpack.c.h.b16 %v398
          %v579 = vunpack.c.l.b16 %v399
          %v580 = vunpack.c.h.b16 %v399
          %v581 = vunpack.c.l.b16 %v400
          %v582 = vunpack.c.h.b16 %v400
          %v583 = vunpack.c.l.b16 %v401
          %v584 = vunpack.c.h.b16 %v401
          %v585 = vunpack.c.l.b16 %v402
          %v586 = vunpack.c.h.b16 %v402
          %v587 = vunpack.c.l.b16 %v403
          %v588 = vunpack.c.h.b16 %v403
          %v589 = vunpack.c.l.b16 %v404
          %v590 = vunpack.c.h.b16 %v404
          %v591 = vunpack.c.l.b16 %v405
          %v592 = vunpack.c.h.b16 %v405
          %v593 = vunpack.c.l.b16 %v406
          %v594 = vunpack.c.h.b16 %v406
          %v595 = vunpack.c.l.b16 %v407
          %v596 = vunpack.c.h.b16 %v407
          %v597 = vunpack.c.l.b16 %v408
          %v598 = vunpack.c.h.b16 %v408
          %v599 = vunpack.c.l.b16 %v409
          %v600 = vunpack.c.h.b16 %v409
          %v601 = vunpack.c.l.b16 %v410
          %v602 = vunpack.c.h.b16 %v410
          %v603 = vunpack.c.l.b16 %v411
          %v604 = vunpack.c.h.b16 %v411
          %v605 = vunpack.c.l.b16 %v412
          %v606 = vunpack.c.h.b16 %v412
          %v607 = vunpack.c.l.b16 %v413
          %v608 = vunpack.c.h.b16 %v413
          %v609 = vunpack.c.l.b16 %v414
          %v610 = vunpack.c.h.b16 %v414
          %v611 = vunpack.c.l.b16 %v415
          %v612 = vunpack.c.h.b16 %v415
          %v613 = vunpack.c.l.b16 %v416
          %v614 = vunpack.c.h.b16 %v416
          %v615 = vunpack.c.l.b16 %v417
          %v616 = vunpack.c.h.b16 %v417
          %v617 = vunpack.c.l.b16 %v418
          %v618 = vunpack.c.h.b16 %v418
          %v619 = vunpack.c.l.b16 %v419
          %v620 = vunpack.c.h.b16 %v419
          %v621 = vunpack.c.l.b16 %v420
          %v622 = vunpack.c.h.b16 %v420
          %v623 = vunpack.c.l.b16 %v421
          %v624 = vunpack.c.h.b16 %v421
          %v625 = vunpack.c.l.b16 %v422
          %v626 = vunpack.c.h.b16 %v422
          %v627 = vunpack.c.l.b16 %v423
          %v628 = vunpack.c.h.b16 %v423
          %v629 = vunpack.c.l.b16 %v424
          %v630 = vunpack.c.h.b16 %v424
          %v631 = vunpack.c.l.b16 %v425
          %v632 = vunpack.c.h.b16 %v425
          %v633 = vunpack.c.l.b16 %v426
          %v634 = vunpack.c.h.b16 %v426
          %v635 = vunpack.c.l.b16 %v427
          %v636 = vunpack.c.h.b16 %v427
          %v637 = vunpack.c.l.b16 %v428
          %v638 = vunpack.c.h.b16 %v428
          %v639 = vunpack.c.l.b16 %v429
          %v640 = vunpack.c.h.b16 %v429
          %v641 = vunpack.c.l.b16 %v430
          %v642 = vunpack.c.h.b16 %v430
          %v643 = vunpack.c.l.b16 %v431
          %v644 = vunpack.c.h.b16 %v431
          %v645 = vunpack.c.l.b16 %v432
          %v646 = vunpack.c.h.b16 %v432
          %v647 = vunpack.c.l.b16 %v433
          %v648 = vunpack.c.h.b16 %v433
          %v649 = vunpack.c.l.b16 %v434
          %v650 = vunpack.c.h.b16 %v434
          %v651 = vunpack.c.l.b16 %v435
          %v652 = vunpack.c.h.b16 %v435
          %v653 = vunpack.c.l.b16 %v436
          %v654 = vunpack.c.h.b16 %v436
          %v655 = vunpack.c.l.b16 %v437
          %v656 = vunpack.c.h.b16 %v437
          %v657 = vunpack.c.l.b16 %v438
          %v658 = vunpack.c.h.b16 %v438
          %v659 = vunpack.c.l.b16 %v439
          %v660 = vunpack.c.h.b16 %v439
          %v661 = vunpack.c.l.b16 %v440
          %v662 = vunpack.c.h.b16 %v440
          %v663 = vunpack.c.l.b16 %v441
          %v664 = vunpack.c.h.b16 %v441
          %v665 = vunpack.c.l.b16 %v442
          %v666 = vunpack.c.h.b16 %v442
          %v667 = vpack.c.b16 %v543, %v539
          %v668 = vpack.c.b16 %v544, %v540
          %v669 = vpack.c.b16 %v545, %v541
          %v670 = vpack.c.b16 %v546, %v542
          %v671 = vpack.c.b16 %v551, %v547
          %v672 = vpack.c.b16 %v552, %v548
          %v673 = vpack.c.b16 %v553, %v549
          %v674 = vpack.c.b16 %v554, %v550
          %v675 = vpack.c.b16 %v559, %v555
          %v676 = vpack.c.b16 %v560, %v556
          %v677 = vpack.c.b16 %v561, %v557
          %v678 = vpack.c.b16 %v562, %v558
          %v679 = vpack.c.b16 %v567, %v563
          %v680 = vpack.c.b16 %v568, %v564
          %v681 = vpack.c.b16 %v569, %v565
          %v682 = vpack.c.b16 %v570, %v566
          %v683 = vpack.c.b16 %v575, %v571
          %v684 = vpack.c.b16 %v576, %v572
          %v685 = vpack.c.b16 %v577, %v573
          %v686 = vpack.c.b16 %v578, %v574
          %v687 = vpack.c.b16 %v583, %v579
          %v688 = vpack.c.b16 %v584, %v580
          %v689 = vpack.c.b16 %v585, %v581
          %v690 = vpack.c.b16 %v586, %v582
          %v691 = vpack.c.b16 %v591, %v587
          %v692 = vpack.c.b16 %v592, %v588
          %v693 = vpack.c.b16 %v593, %v589
          %v694 = vpack.c.b16 %v594, %v590
          %v695 = vpack.c.b16 %v599, %v595
          %v696 = vpack.c.b16 %v600, %v596
          %v697 = vpack.c.b16 %v601, %v597
          %v698 = vpack.c.b16 %v602, %v598
          %v699 = vpack.c.b16 %v607, %v603
          %v700 = vpack.c.b16 %v608, %v604
          %v701 = vpack.c.b16 %v609, %v605
          %v702 = vpack.c.b16 %v610, %v606
          %v703 = vpack.c.b16 %v615, %v611
          %v704 = vpack.c.b16 %v616, %v612
          %v705 = vpack.c.b16 %v617, %v613
          %v706 = vpack.c.b16 %v618, %v614
          %v707 = vpack.c.b16 %v623, %v619
          %v708 = vpack.c.b16 %v624, %v620
          %v709 = vpack.c.b16 %v625, %v621
          %v710 = vpack.c.b16 %v626, %v622
          %v711 = vpack.c.b16 %v631, %v627
          %v712 = vpack.c.b16 %v632, %v628
          %v713 = vpack.c.b16 %v633, %v629
          %v714 = vpack.c.b16 %v634, %v630
          %v715 = vpack.c.b16 %v639, %v635
          %v716 = vpack.c.b16 %v640, %v636
          %v717 = vpack.c.b16 %v641, %v637
          %v718 = vpack.c.b16 %v642, %v638
          %v719 = vpack.c.b16 %v647, %v643
          %v720 = vpack.c.b16 %v648, %v644
          %v721 = vpack.c.b16 %v649, %v645
          %v722 = vpack.c.b16 %v650, %v646
          %v723 = vpack.c.b16 %v655, %v651
          %v724 = vpack.c.b16 %v656, %v652
          %v725 = vpack.c.b16 %v657, %v653
          %v726 = vpack.c.b16 %v658, %v654
          %v727 = vpack.c.b16 %v663, %v659
          %v728 = vpack.c.b16 %v664, %v660
          %v729 = vpack.c.b16 %v665, %v661
          %v730 = vpack.c.b16 %v666, %v662
          %795 = vmatprep.subr.bf16.mxu0 %v696
          %796 = vmatpush1.bf16.msra.mxu0 %v695
          %797 = vmatprep.subr.bf16.mxu0 %v692
          %798 = vmatpush1.bf16.msra.mxu0 %v691
          %799 = vmatprep.subr.bf16.mxu0 %v688
          %800 = vmatpush1.bf16.msra.mxu0 %v687
          %801 = vmatprep.subr.bf16.mxu0 %v684
          %802 = vmatpush1.bf16.msra.mxu0 %v683
          %803 = vmatprep.subr.bf16.mxu0 %v680
          %804 = vmatpush1.bf16.msra.mxu0 %v679
          %805 = vmatprep.subr.bf16.mxu0 %v676
          %806 = vmatpush1.bf16.msra.mxu0 %v675
          %807 = vmatprep.subr.bf16.mxu0 %v672
          %808 = vmatpush1.bf16.msra.mxu0 %v671
          %809 = vmatprep.subr.bf16.mxu0 %v668
          %810 = vmatpush1.bf16.msra.mxu0 %v667
          %811 = vmatprep.subr.bf16.mxu0 %v728
          %812 = vmatpush2.bf16.msra.mxu0 %v727
          %813 = vmatprep.subr.bf16.mxu0 %v724
          %814 = vmatpush2.bf16.msra.mxu0 %v723
          %815 = vmatprep.subr.bf16.mxu0 %v720
          %816 = vmatpush2.bf16.msra.mxu0 %v719
          %817 = vmatprep.subr.bf16.mxu0 %v716
          %818 = vmatpush2.bf16.msra.mxu0 %v715
          %819 = vmatprep.subr.bf16.mxu0 %v712
          %820 = vmatpush2.bf16.msra.mxu0 %v711
          %821 = vmatprep.subr.bf16.mxu0 %v708
          %822 = vmatpush2.bf16.msra.mxu0 %v707
          %823 = vmatprep.subr.bf16.mxu0 %v704
          %824 = vmatpush2.bf16.msra.mxu0 %v703
          %825 = vmatprep.subr.bf16.mxu0 %v700
          %826 = vmatpush2.bf16.msra.mxu0 %v699
          %827 = vmatprep.mubr.bf16.mxu0 %v472
          %828 = vmatmul.mubr.bf16.gmra.mxu0 %v471
          %v829 = vpop.f32.mrf.mxu0
          %v830 = vadd.f32 %v448, %v829
          %v831 = vpop.f32.mrf.mxu0
          %v832 = vadd.f32 %v452, %v831
          %v833 = vpop.f32.mrf.mxu0
          %v834 = vadd.f32 %v448, %v833
          %v835 = vpop.f32.mrf.mxu0
          %v836 = vadd.f32 %v452, %v835
          %837 = vdwg.mxu0
          %838 = vmatprep.subr.bf16.mxu0 %v698
          %839 = vmatpush1.bf16.msra.mxu0 %v697
          %840 = vmatprep.subr.bf16.mxu0 %v694
          %841 = vmatpush1.bf16.msra.mxu0 %v693
          %842 = vmatprep.subr.bf16.mxu0 %v690
          %843 = vmatpush1.bf16.msra.mxu0 %v689
          %844 = vmatprep.subr.bf16.mxu0 %v686
          %845 = vmatpush1.bf16.msra.mxu0 %v685
          %846 = vmatprep.subr.bf16.mxu0 %v682
          %847 = vmatpush1.bf16.msra.mxu0 %v681
          %848 = vmatprep.subr.bf16.mxu0 %v678
          %849 = vmatpush1.bf16.msra.mxu0 %v677
          %850 = vmatprep.subr.bf16.mxu0 %v674
          %851 = vmatpush1.bf16.msra.mxu0 %v673
          %852 = vmatprep.subr.bf16.mxu0 %v670
          %853 = vmatpush1.bf16.msra.mxu0 %v669
          %854 = vmatprep.subr.bf16.mxu0 %v730
          %855 = vmatpush2.bf16.msra.mxu0 %v729
          %856 = vmatprep.subr.bf16.mxu0 %v726
          %857 = vmatpush2.bf16.msra.mxu0 %v725
          %858 = vmatprep.subr.bf16.mxu0 %v722
          %859 = vmatpush2.bf16.msra.mxu0 %v721
          %860 = vmatprep.subr.bf16.mxu0 %v718
          %861 = vmatpush2.bf16.msra.mxu0 %v717
          %862 = vmatprep.subr.bf16.mxu0 %v714
          %863 = vmatpush2.bf16.msra.mxu0 %v713
          %864 = vmatprep.subr.bf16.mxu0 %v710
          %865 = vmatpush2.bf16.msra.mxu0 %v709
          %866 = vmatprep.subr.bf16.mxu0 %v706
          %867 = vmatpush2.bf16.msra.mxu0 %v705
          %868 = vmatprep.subr.bf16.mxu0 %v702
          %869 = vmatpush2.bf16.msra.mxu0 %v701
          %870 = vmatprep.mubr.bf16.mxu0 %v472
          %871 = vmatmul.mubr.bf16.gmra.mxu0 %v471
          %v872 = vpop.f32.mrf.mxu0
          %v873 = vadd.f32 %v456, %v872
          %v874 = vpop.f32.mrf.mxu0
          %v875 = vadd.f32 %v460, %v874
          %v876 = vpop.f32.mrf.mxu0
          %v877 = vadd.f32 %v456, %v876
          %v878 = vpop.f32.mrf.mxu0
          %v879 = vadd.f32 %v460, %v878
          %880 = vdwg.mxu0
          %vm881 = vcmp.gt.f32.partialorder %v830, 0.0
          %vm882 = vcmp.gt.f32.partialorder %v832, 0.0
          %vm883 = vcmp.gt.f32.partialorder %v873, 0.0
          %vm884 = vcmp.gt.f32.partialorder %v875, 0.0
          %vm885 = vcmp.gt.f32.partialorder %v834, 0.0
          %vm886 = vcmp.gt.f32.partialorder %v836, 0.0
          %vm887 = vcmp.gt.f32.partialorder %v877, 0.0
          %vm888 = vcmp.gt.f32.partialorder %v879, 0.0
          %v889 = vmul.f32 %v830, 0.01
          %v890 = vmul.f32 %v832, 0.01
          %v891 = vmul.f32 %v873, 0.01
          %v892 = vmul.f32 %v875, 0.01
          %v893 = vmul.f32 %v834, 0.01
          %v894 = vmul.f32 %v836, 0.01
          %v895 = vmul.f32 %v877, 0.01
          %v896 = vmul.f32 %v879, 0.01
          %v897 = vsel %vm881, %v830, %v889
          %v898 = vsel %vm882, %v832, %v890
          %v899 = vsel %vm883, %v873, %v891
          %v900 = vsel %vm884, %v875, %v892
          %v901 = vsel %vm885, %v834, %v893
          %v902 = vsel %vm886, %v836, %v894
          %v903 = vsel %vm887, %v877, %v895
          %v904 = vsel %vm888, %v879, %v896
          %v905 = vpack.c.bf16 %v901, %v897
          %v906 = vpack.c.bf16 %v902, %v898
          %v907 = vpack.c.bf16 %v903, %v899
          %v908 = vpack.c.bf16 %v904, %v900
          %v909 = vld [vmem:[#allocation10] sm:$0xf]
          %v910 = vld [vmem:[#allocation10 + $0x4] sm:$0xf]
          %v911 = vld [vmem:[#allocation10 + $0x8] sm:$0xf]
          %v912 = vld [vmem:[#allocation10 + $0xc] sm:$0xf]
          %v913 = vld [vmem:[#allocation10 + $0x10] sm:$0xf]
          %v914 = vld [vmem:[#allocation10 + $0x14] sm:$0xf]
          %v915 = vld [vmem:[#allocation10 + $0x18] sm:$0xf]
          %v916 = vld [vmem:[#allocation10 + $0x1c] sm:$0xf]
          %v917 = vld [vmem:[#allocation10 + $0x20] sm:$0xf]
          %v918 = vld [vmem:[#allocation10 + $0x24] sm:$0xf]
          %v919 = vld [vmem:[#allocation10 + $0x28] sm:$0xf]
          %v920 = vld [vmem:[#allocation10 + $0x2c] sm:$0xf]
          %v921 = vld [vmem:[#allocation10 + $0x30] sm:$0xf]
          %v922 = vld [vmem:[#allocation10 + $0x34] sm:$0xf]
          %v923 = vld [vmem:[#allocation10 + $0x38] sm:$0xf]
          %v924 = vld [vmem:[#allocation10 + $0x3c] sm:$0xf]
          %v925 = vld [vmem:[#allocation10 + $0x40] sm:$0xf]
          %v926 = vld [vmem:[#allocation10 + $0x44] sm:$0xf]
          %v927 = vld [vmem:[#allocation10 + $0x48] sm:$0xf]
          %v928 = vld [vmem:[#allocation10 + $0x4c] sm:$0xf]
          %v929 = vld [vmem:[#allocation10 + $0x50] sm:$0xf]
          %v930 = vld [vmem:[#allocation10 + $0x54] sm:$0xf]
          %v931 = vld [vmem:[#allocation10 + $0x58] sm:$0xf]
          %v932 = vld [vmem:[#allocation10 + $0x5c] sm:$0xf]
          %v933 = vld [vmem:[#allocation10 + $0x60] sm:$0xf]
          %v934 = vld [vmem:[#allocation10 + $0x64] sm:$0xf]
          %v935 = vld [vmem:[#allocation10 + $0x68] sm:$0xf]
          %v936 = vld [vmem:[#allocation10 + $0x6c] sm:$0xf]
          %v937 = vld [vmem:[#allocation10 + $0x70] sm:$0xf]
          %v938 = vld [vmem:[#allocation10 + $0x74] sm:$0xf]
          %v939 = vld [vmem:[#allocation10 + $0x78] sm:$0xf]
          %v940 = vld [vmem:[#allocation10 + $0x7c] sm:$0xf]
          %v941 = vld [vmem:[#allocation10 + $0x80] sm:$0xf]
          %v942 = vld [vmem:[#allocation10 + $0x84] sm:$0xf]
          %v943 = vld [vmem:[#allocation10 + $0x88] sm:$0xf]
          %v944 = vld [vmem:[#allocation10 + $0x8c] sm:$0xf]
          %v945 = vld [vmem:[#allocation10 + $0x90] sm:$0xf]
          %v946 = vld [vmem:[#allocation10 + $0x94] sm:$0xf]
          %v947 = vld [vmem:[#allocation10 + $0x98] sm:$0xf]
          %v948 = vld [vmem:[#allocation10 + $0x9c] sm:$0xf]
          %v949 = vld [vmem:[#allocation10 + $0xa0] sm:$0xf]
          %v950 = vld [vmem:[#allocation10 + $0xa4] sm:$0xf]
          %v951 = vld [vmem:[#allocation10 + $0xa8] sm:$0xf]
          %v952 = vld [vmem:[#allocation10 + $0xac] sm:$0xf]
          %v953 = vld [vmem:[#allocation10 + $0xb0] sm:$0xf]
          %v954 = vld [vmem:[#allocation10 + $0xb4] sm:$0xf]
          %v955 = vld [vmem:[#allocation10 + $0xb8] sm:$0xf]
          %v956 = vld [vmem:[#allocation10 + $0xbc] sm:$0xf]
          %v957 = vld [vmem:[#allocation10 + $0xc0] sm:$0xf]
          %v958 = vld [vmem:[#allocation10 + $0xc4] sm:$0xf]
          %v959 = vld [vmem:[#allocation10 + $0xc8] sm:$0xf]
          %v960 = vld [vmem:[#allocation10 + $0xcc] sm:$0xf]
          %v961 = vld [vmem:[#allocation10 + $0xd0] sm:$0xf]
          %v962 = vld [vmem:[#allocation10 + $0xd4] sm:$0xf]
          %v963 = vld [vmem:[#allocation10 + $0xd8] sm:$0xf]
          %v964 = vld [vmem:[#allocation10 + $0xdc] sm:$0xf]
          %v965 = vld [vmem:[#allocation10 + $0xe0] sm:$0xf]
          %v966 = vld [vmem:[#allocation10 + $0xe4] sm:$0xf]
          %v967 = vld [vmem:[#allocation10 + $0xe8] sm:$0xf]
          %v968 = vld [vmem:[#allocation10 + $0xec] sm:$0xf]
          %v969 = vld [vmem:[#allocation10 + $0xf0] sm:$0xf]
          %v970 = vld [vmem:[#allocation10 + $0xf4] sm:$0xf]
          %v971 = vld [vmem:[#allocation10 + $0xf8] sm:$0xf]
          %v972 = vld [vmem:[#allocation10 + $0xfc] sm:$0xf]
          %v973 = vld [vmem:[%s4] sm:$0x1]
          %v975 = vlaneseq
          %v976 = vshrl.u32 %v975, 7
          %v977 = vsub.s32 0, %v976
          %v978 = vrot.slane %v973, %v977
          %v1044 = vunpack.c.l.b16 %v909
          %v1045 = vunpack.c.l.b16 %v910
          %v1046 = vunpack.c.l.b16 %v911
          %v1047 = vunpack.c.l.b16 %v912
          %v1048 = vunpack.c.l.b16 %v913
          %v1049 = vunpack.c.l.b16 %v914
          %v1050 = vunpack.c.l.b16 %v915
          %v1051 = vunpack.c.l.b16 %v916
          %v1052 = vunpack.c.l.b16 %v917
          %v1053 = vunpack.c.l.b16 %v918
          %v1054 = vunpack.c.l.b16 %v919
          %v1055 = vunpack.c.l.b16 %v920
          %v1056 = vunpack.c.l.b16 %v921
          %v1057 = vunpack.c.l.b16 %v922
          %v1058 = vunpack.c.l.b16 %v923
          %v1059 = vunpack.c.l.b16 %v924
          %v1060 = vunpack.c.l.b16 %v925
          %v1061 = vunpack.c.l.b16 %v926
          %v1062 = vunpack.c.l.b16 %v927
          %v1063 = vunpack.c.l.b16 %v928
          %v1064 = vunpack.c.l.b16 %v929
          %v1065 = vunpack.c.l.b16 %v930
          %v1066 = vunpack.c.l.b16 %v931
          %v1067 = vunpack.c.l.b16 %v932
          %v1068 = vunpack.c.l.b16 %v933
          %v1069 = vunpack.c.l.b16 %v934
          %v1070 = vunpack.c.l.b16 %v935
          %v1071 = vunpack.c.l.b16 %v936
          %v1072 = vunpack.c.l.b16 %v937
          %v1073 = vunpack.c.l.b16 %v938
          %v1074 = vunpack.c.l.b16 %v939
          %v1075 = vunpack.c.l.b16 %v940
          %v1076 = vunpack.c.l.b16 %v941
          %v1077 = vunpack.c.l.b16 %v942
          %v1078 = vunpack.c.l.b16 %v943
          %v1079 = vunpack.c.l.b16 %v944
          %v1080 = vunpack.c.l.b16 %v945
          %v1081 = vunpack.c.l.b16 %v946
          %v1082 = vunpack.c.l.b16 %v947
          %v1083 = vunpack.c.l.b16 %v948
          %v1084 = vunpack.c.l.b16 %v949
          %v1085 = vunpack.c.l.b16 %v950
          %v1086 = vunpack.c.l.b16 %v951
          %v1087 = vunpack.c.l.b16 %v952
          %v1088 = vunpack.c.l.b16 %v953
          %v1089 = vunpack.c.l.b16 %v954
          %v1090 = vunpack.c.l.b16 %v955
          %v1091 = vunpack.c.l.b16 %v956
          %v1092 = vunpack.c.l.b16 %v957
          %v1093 = vunpack.c.l.b16 %v958
          %v1094 = vunpack.c.l.b16 %v959
          %v1095 = vunpack.c.l.b16 %v960
          %v1096 = vunpack.c.l.b16 %v961
          %v1097 = vunpack.c.l.b16 %v962
          %v1098 = vunpack.c.l.b16 %v963
          %v1099 = vunpack.c.l.b16 %v964
          %v1100 = vunpack.c.l.b16 %v965
          %v1101 = vunpack.c.l.b16 %v966
          %v1102 = vunpack.c.l.b16 %v967
          %v1103 = vunpack.c.l.b16 %v968
          %v1104 = vunpack.c.l.b16 %v969
          %v1105 = vunpack.c.l.b16 %v970
          %v1106 = vunpack.c.l.b16 %v971
          %v1107 = vunpack.c.l.b16 %v972
          %v1108 = vpack.c.b16 %v1045, %v1044
          %v1109 = vpack.c.b16 %v1047, %v1046
          %v1110 = vpack.c.b16 %v1049, %v1048
          %v1111 = vpack.c.b16 %v1051, %v1050
          %v1112 = vpack.c.b16 %v1053, %v1052
          %v1113 = vpack.c.b16 %v1055, %v1054
          %v1114 = vpack.c.b16 %v1057, %v1056
          %v1115 = vpack.c.b16 %v1059, %v1058
          %v1116 = vpack.c.b16 %v1061, %v1060
          %v1117 = vpack.c.b16 %v1063, %v1062
          %v1118 = vpack.c.b16 %v1065, %v1064
          %v1119 = vpack.c.b16 %v1067, %v1066
          %v1120 = vpack.c.b16 %v1069, %v1068
          %v1121 = vpack.c.b16 %v1071, %v1070
          %v1122 = vpack.c.b16 %v1073, %v1072
          %v1123 = vpack.c.b16 %v1075, %v1074
          %v1124 = vpack.c.b16 %v1077, %v1076
          %v1125 = vpack.c.b16 %v1079, %v1078
          %v1126 = vpack.c.b16 %v1081, %v1080
          %v1127 = vpack.c.b16 %v1083, %v1082
          %v1128 = vpack.c.b16 %v1085, %v1084
          %v1129 = vpack.c.b16 %v1087, %v1086
          %v1130 = vpack.c.b16 %v1089, %v1088
          %v1131 = vpack.c.b16 %v1091, %v1090
          %v1132 = vpack.c.b16 %v1093, %v1092
          %v1133 = vpack.c.b16 %v1095, %v1094
          %v1134 = vpack.c.b16 %v1097, %v1096
          %v1135 = vpack.c.b16 %v1099, %v1098
          %v1136 = vpack.c.b16 %v1101, %v1100
          %v1137 = vpack.c.b16 %v1103, %v1102
          %v1138 = vpack.c.b16 %v1105, %v1104
          %v1139 = vpack.c.b16 %v1107, %v1106
          %1172 = vmatprep.subr.bf16.mxu0 0
          %1173 = vmatpush1.bf16.msra.mxu0 %v1115
          %1174 = vmatprep.subr.bf16.mxu0 0
          %1175 = vmatpush1.bf16.msra.mxu0 %v1114
          %1176 = vmatprep.subr.bf16.mxu0 0
          %1177 = vmatpush1.bf16.msra.mxu0 %v1113
          %1178 = vmatprep.subr.bf16.mxu0 0
          %1179 = vmatpush1.bf16.msra.mxu0 %v1112
          %1180 = vmatprep.subr.bf16.mxu0 0
          %1181 = vmatpush1.bf16.msra.mxu0 %v1111
          %1182 = vmatprep.subr.bf16.mxu0 0
          %1183 = vmatpush1.bf16.msra.mxu0 %v1110
          %1184 = vmatprep.subr.bf16.mxu0 0
          %1185 = vmatpush1.bf16.msra.mxu0 %v1109
          %1186 = vmatprep.subr.bf16.mxu0 0
          %1187 = vmatpush1.bf16.msra.mxu0 %v1108
          %1188 = vmatprep.subr.bf16.mxu0 0
          %1189 = vmatpush2.bf16.msra.mxu0 %v1123
          %1190 = vmatprep.subr.bf16.mxu0 0
          %1191 = vmatpush2.bf16.msra.mxu0 %v1122
          %1192 = vmatprep.subr.bf16.mxu0 0
          %1193 = vmatpush2.bf16.msra.mxu0 %v1121
          %1194 = vmatprep.subr.bf16.mxu0 0
          %1195 = vmatpush2.bf16.msra.mxu0 %v1120
          %1196 = vmatprep.subr.bf16.mxu0 0
          %1197 = vmatpush2.bf16.msra.mxu0 %v1119
          %1198 = vmatprep.subr.bf16.mxu0 0
          %1199 = vmatpush2.bf16.msra.mxu0 %v1118
          %1200 = vmatprep.subr.bf16.mxu0 0
          %1201 = vmatpush2.bf16.msra.mxu0 %v1117
          %1202 = vmatprep.subr.bf16.mxu0 0
          %1203 = vmatpush2.bf16.msra.mxu0 %v1116
          %1204 = vmatprep.mubr.bf16.mxu0 %v906
          %1205 = vmatmul.mubr.bf16.gmra.mxu0 %v905
          %v1206 = vpop.f32.mrf.mxu0
          %v1207 = vadd.f32 %v978, %v1206
          %v1208 = vpop.f32.mrf.mxu0
          %v1209 = vpop.f32.mrf.mxu0
          %v1210 = vadd.f32 %v978, %v1209
          %v1211 = vpop.f32.mrf.mxu0
          %1212 = vdwg.mxu0
          %1213 = vmatprep.subr.bf16.mxu0 0
          %1214 = vmatpush1.bf16.msra.mxu0 %v1131
          %1215 = vmatprep.subr.bf16.mxu0 0
          %1216 = vmatpush1.bf16.msra.mxu0 %v1130
          %1217 = vmatprep.subr.bf16.mxu0 0
          %1218 = vmatpush1.bf16.msra.mxu0 %v1129
          %1219 = vmatprep.subr.bf16.mxu0 0
          %1220 = vmatpush1.bf16.msra.mxu0 %v1128
          %1221 = vmatprep.subr.bf16.mxu0 0
          %1222 = vmatpush1.bf16.msra.mxu0 %v1127
          %1223 = vmatprep.subr.bf16.mxu0 0
          %1224 = vmatpush1.bf16.msra.mxu0 %v1126
          %1225 = vmatprep.subr.bf16.mxu0 0
          %1226 = vmatpush1.bf16.msra.mxu0 %v1125
          %1227 = vmatprep.subr.bf16.mxu0 0
          %1228 = vmatpush1.bf16.msra.mxu0 %v1124
          %1229 = vmatprep.subr.bf16.mxu0 0
          %1230 = vmatpush2.bf16.msra.mxu0 %v1139
          %1231 = vmatprep.subr.bf16.mxu0 0
          %1232 = vmatpush2.bf16.msra.mxu0 %v1138
          %1233 = vmatprep.subr.bf16.mxu0 0
          %1234 = vmatpush2.bf16.msra.mxu0 %v1137
          %1235 = vmatprep.subr.bf16.mxu0 0
          %1236 = vmatpush2.bf16.msra.mxu0 %v1136
          %1237 = vmatprep.subr.bf16.mxu0 0
          %1238 = vmatpush2.bf16.msra.mxu0 %v1135
          %1239 = vmatprep.subr.bf16.mxu0 0
          %1240 = vmatpush2.bf16.msra.mxu0 %v1134
          %1241 = vmatprep.subr.bf16.mxu0 0
          %1242 = vmatpush2.bf16.msra.mxu0 %v1133
          %1243 = vmatprep.subr.bf16.mxu0 0
          %1244 = vmatpush2.bf16.msra.mxu0 %v1132
          %1245 = vmatprep.mubr.bf16.mxu0 %v908
          %1246 = vmatmul.mubr.bf16.gmra.mxu0 %v907
          %v1247 = vpop.f32.mrf.mxu0
          %v1248 = vadd.f32 %v1207, %v1247
          %v1249 = vpop.f32.mrf.mxu0
          %v1250 = vpop.f32.mrf.mxu0
          %v1251 = vadd.f32 %v1210, %v1250
          %v1252 = vpop.f32.mrf.mxu0
          %1253 = vdwg.mxu0
          %s1254 = scalar_lea.vmem [#allocation2], %s366
          %1255 = vst [vmem:[%s1254] sm:$0xff] %v1248
          %1256 = vst [vmem:[%s1254 + $0x8] sm:$0xff] %v1251
          %v1257 = vld [vmem:[#allocation3] sm:$0x3]
          %v1258 = vadd.f32 %v1248, %v1251
          %v1259 = vrot.slane %v1258, 4
          %v1260 = vadd.f32 %v1258, %v1259
          %v1261 = vrot.slane %v1260, 2
          %v1262 = vadd.f32 %v1260, %v1261
          %v1263 = vrot.slane %v1262, 1
          %v1264 = vadd.f32 %v1262, %v1263
          %v1265 = vmul.f32 %v1248, %v1248
          %v1266 = vmul.f32 %v1251, %v1251
          %v1267 = vadd.f32 %v1265, %v1266
          %v1268 = vrot.slane %v1267, 4
          %v1269 = vadd.f32 %v1267, %v1268
          %v1270 = vrot.slane %v1269, 2
          %v1271 = vadd.f32 %v1269, %v1270
          %v1272 = vrot.slane %v1271, 1
          %v1273 = vadd.f32 %v1271, %v1272
          %vm1274 = vcmask 1040384
          %v1275 = vsel %vm1274, %v1264, %v1273
          %v1276 = vadd.f32 %v1257, %v1275
          %1277 = vst [vmem:[#allocation3] sm:$0x3] %v1276
        $region72: #{tpu_custom_call.1} parent=47 // pred_fallthru
          _
        %p1278 = scmp.eq.s32.totalorder %s30, 1
        // Predicated region
        $region73: #{tpu_custom_call.1} parent=47 // pred_check
          %p1279 = pneg %p1278
        $region74: #{tpu_custom_call.1} parent=47 // pred_check_branch
          %1281 = sbr.rel (%p1279) target = $region76
        $region75: #{tpu_custom_call.1} parent=47 // pred_region
          %v1282 = vld [vmem:[#allocation3] sm:$0x3]
          %v1283 = vld [vmem:[%s5] sm:$0x1]
          %v1284 = vld [vmem:[%s6] sm:$0x1]
          %v1285 = vmul.f32 %v1282, 0.0625
          %v1286 = vmul.f32 %v1285, %v1285
          %v1288 = vrot.slane %v1286, 7
          %v1290 = vsub.f32 %v1285, %v1288
          %v1291 = vadd.f32 %v1290, 1e-05
          %v1292 = vrsqrt.pop %v1291
          %v1294 = vlaneseq
          %v1295 = vshrl.u32 %v1294, 7
          %v1296 = vsub.s32 0, %v1295
          %v1297 = vrot.slane %v1283, %v1296
          %v1299 = vmul.f32 %v1292, %v1297
          %v1301 = vrot.slane %v1299, 1
          %v1303 = vmul.f32 %v1285, %v1301
          %v1304 = vsub.f32 %v1284, %v1303
          %s1305 = scalar_lea.vmem [#allocation2], %s366
          %v1306 = vld [vmem:[%s1305] sm:$0xff]
          %v1307 = vld [vmem:[%s1305 + $0x8] sm:$0xff]
          %v1308 = vlaneseq
          %v1309 = vshrl.u32 %v1308, 7
          %v1310 = vsub.s32 1, %v1309
          %v1311 = vrot.slane %v1299, %v1310
          %v1312 = vmul.f32 %v1306, %v1311
          %v1313 = vmul.f32 %v1307, %v1311
          %v1315 = vlaneseq
          %v1316 = vshrl.u32 %v1315, 7
          %v1317 = vsub.s32 0, %v1316
          %v1318 = vrot.slane %v1304, %v1317
          %v1320 = vadd.f32 %v1312, %v1318
          %v1321 = vadd.f32 %v1313, %v1318
          %1322 = vst [vmem:[%s359] sm:$0xff] %v1320
          %1323 = vst [vmem:[%s359 + $0x8] sm:$0xff] %v1321
        $region76: #{tpu_custom_call.1} parent=47 // pred_fallthru
          _
        %s1324 = sand.u32 %s204, 1
        %s1325 = scalar_lea.sflag [#allocation6], %s1324
        %s1326 = sand.u32 %s204, 1
        %s1327 = smul.addr %s1326, 16
        %s1328 = scalar_lea.vmem [#allocation12], %s1327
        // Predicated region
        $region77: #{tpu_custom_call.1} parent=47 // pred_check
          %p1329 = pneg %p214
        $region78: #{tpu_custom_call.1} parent=47 // pred_check_branch
          %1331 = sbr.rel (%p1329) target = $region80
        $region79: #{tpu_custom_call.1} parent=47 // pred_region
          %s1332 = smul.u32 %s31, %s30
          %s1333 = smul.u32 2, %s1332
          %s1335 = ssub.s32 256, 256
          %1336 = vsyncadd %s1325, %s1335
          %s1337 = smul.addr %s1333, 128
          %s1338 = scalar_lea.hbm %s7, %s1337
          %s1339 = sshll.u32 %s1328, 4
          %s1340 = int_to_ptr.vmem [resolvable:$true] %s1339
          %1345 = dma.vmem_to_hbm [thread:$0]  %s1340, 256, %s1338, %s1325, 128, 128, 8
        $region80: #{tpu_custom_call.1} parent=47 // pred_fallthru
          _
      $region48: #{tpu_custom_call.1} parent=5 // pred_fallthru
        _
      %p1346 = scmp.le.s32.totalorder 2, %s21
      // Predicated region
      $region81: #{tpu_custom_call.1} parent=5 // pred_check
        %p1347 = pneg %p1346
      $region82: #{tpu_custom_call.1} parent=5 // pred_check_branch
        %1349 = sbr.rel (%p1347) target = $region84
      $region83: #{tpu_custom_call.1} parent=5 // pred_region
        %s1350 = ssub.s32 %s21, 2
        // Predicated region
        $region85: #{tpu_custom_call.1} parent=83 // pred_check
          %p1351 = pneg %p220
        $region86: #{tpu_custom_call.1} parent=83 // pred_check_branch
          %1353 = sbr.rel (%p1351) target = $region88
        $region87: #{tpu_custom_call.1} parent=83 // pred_region
          %s1354 = sand.u32 %s205, 1
          %s1355 = scalar_lea.sflag [#allocation6], %s1354
          %s1356 = sand.u32 %s205, 1
          %s1357 = smul.addr %s1356, 16
          %s1358 = scalar_lea.vmem [#allocation12], %s1357
          %1359 = dma.done %s1355, 256
        $region88: #{tpu_custom_call.1} parent=83 // pred_fallthru
          _
      $region84: #{tpu_custom_call.1} parent=5 // pred_fallthru
        _
    $region6: #{tpu_custom_call.1} parent=1 // loop_footer
      %s25 = sadd.s32 1, %s21
    $region7: #{tpu_custom_call.1} parent=1 // loop_footer_branch
      %20 = sbr.rel target = $region3
    $region8: #{tpu_custom_call.1} parent=1 // loop_exit
      _
    %1360 = vsyncpa [#allocation5], 1
    %s1361 = scalar_lea.sflag [#allocation5], 1
    %1362 = vsyncpa %s1361, 1
    %1363 = vsyncpa [#allocation8], 1
    %1364 = vsyncpa [#allocation11], 1
    %1365 = vsyncpa [#allocation6], 1
    %s1366 = scalar_lea.sflag [#allocation6], 1
    %1367 = vsyncpa %s1366, 1

</llo_original>
